<compile_context>
chip_gen: v5e
topology: v5e:2x2
jax: 0.10.0
libtpu: 0.0.40
codegen_flags: <defaults>
</compile_context>

<pallas_src>
import jax
import jax.numpy as jnp
from jax import lax
from jax.experimental import pallas as pl
from jax.experimental.pallas import tpu as pltpu

LN_EPS = 1e-5  # nn.LayerNorm default


def ffn_kernel(x_ref, w1_ref, b1_ref, w2_ref, b2_ref, gamma_ref, beta_ref,
               o_ref, acc_ref):
    k = pl.program_id(1)

    @pl.when(k == 0)
    def _():
        acc_ref[...] = jnp.zeros_like(acc_ref)

    # MXU operands stay in native dtype (bf16 if inputs are bf16); f32 accumulation.
    x = x_ref[...]                                                       # (tm, D)
    h = jnp.dot(x, w1_ref[...], preferred_element_type=jnp.float32)      # (tm, tH) f32
    h = jnp.maximum(h + b1_ref[...].astype(jnp.float32), 0.0)            # bias + ReLU per chunk
    acc_ref[...] += jnp.dot(h.astype(w2_ref.dtype), w2_ref[...],
                            preferred_element_type=jnp.float32)          # (tm, D) f32

    # TODO(synk): dropout_rate=0.0 -> identity; nonzero rate would need pltpu.prng_* masking.

    @pl.when(k == pl.num_programs(1) - 1)
    def _():
        b2v = b2_ref[...].astype(jnp.float32)    # (1, D)
        gv = gamma_ref[...].astype(jnp.float32)  # (1, D)
        bv = beta_ref[...].astype(jnp.float32)   # (1, D)
        # Residual + LayerNorm epilogue in f32 (VPU/EUP), matching nn.LayerNorm(eps=1e-5).
        r = x.astype(jnp.float32) + acc_ref[...] + b2v
        mean = jnp.mean(r, axis=-1, keepdims=True)
        cent = r - mean
        var = jnp.mean(cent * cent, axis=-1, keepdims=True)
        inv = lax.rsqrt(var + LN_EPS)
        o_ref[...] = (cent * inv * gv + bv).astype(o_ref.dtype)


def _round_up(a, b):
    return ((a + b - 1) // b) * b


def feed_forward(x, w1, b1, w2, b2, gamma, beta, *, tm=512, th=None):
    """x: (batch, seq, model_dim). Returns same shape/dtype.

    Feed x / weights in bfloat16 where the model tolerates it: the kernel keeps f32
    accumulation + a f32 LayerNorm epilogue, and bf16 MXU operands run at native rate
    while halving the weight VMEM/DMA footprint.
    """
    B, S, D = x.shape
    H = w1.shape[1]
    rows = B * S
    x2 = x.reshape(rows, D)

    # ---- row tile: multiple of 8 sublanes; guarantee >= 2 row tiles when possible so
    # dimension_semantics=("parallel", ...) can shard rows across v7x's two TensorCores.
    if rows < 8:
        tm = rows                                   # block dim == full extent
    else:
        tm = max(8, min(tm, _round_up(pl.cdiv(rows, 2), 8)))
    n_row_tiles = pl.cdiv(rows, tm)                 # ragged last block handled by Pallas

    # ---- generation-aware VMEM budget ----
    isz = jnp.dtype(x.dtype).itemsize
    wsz = jnp.dtype(w1.dtype).itemsize
    osz = isz
    try:
        vmem_cap = int(pltpu.get_tpu_info().vmem_capacity_bytes)
    except Exception:
        vmem_cap = 64 * 1024 * 1024                 # conservative: v7x per-TC VMEM
    budget = int(0.85 * vmem_cap)

    def est_bytes(tH):
        kt = H // tH
        wbuf = 1 if kt == 1 else 2                  # constant-index chunks: single-buffered
        return int(
            2 * tm * D * isz                        # x tile (double-buffered)
            + 2 * tm * D * osz                      # out tile (double-buffered)
            + wbuf * (D * tH + tH * D + tH) * wsz   # W1 / W2 / b1 chunks
            + 3 * D * wsz                           # b2, gamma, beta (Buffered(1))
            + tm * D * 4                            # f32 accumulator scratch
            + tm * tH * 4 + tm * D * 4              # f32 intermediates (h, partial y)
        )

    # ---- hidden tile: largest divisor of H (multiple of 256 for MXU/lane alignment,
    # or H itself) whose working set fits the budget. ----
    if th is None:
        cands = [H] + [c for c in range(256 * (H // 256), 0, -256)
                       if c < H and H % c == 0]
        th = cands[-1]
        for c in cands:
            if est_bytes(c) <= budget:
                th = c
                break
    assert H % th == 0, "hidden tile must divide hidden_dim"
    k_tiles = H // th
    # TODO(synk): non-128/256-aligned model_dim D would need host-side weight padding plus
    # a masked LayerNorm; not needed for the module defaults (D=256).

    vmem_limit = min(max(int(est_bytes(th) * 1.25), 32 * 1024 * 1024), budget)

    # ---- BlockSpecs ----
    single = pl.Buffered(1)
    w_kwargs = dict(pipeline_mode=single) if k_tiles == 1 else {}  # resident weights: no 2x
    in_specs = [
        pl.BlockSpec((tm, D), lambda i, k: (i, 0)),                      # x tile
        pl.BlockSpec((D, th), lambda i, k: (0, k), **w_kwargs),          # W1 chunk
        pl.BlockSpec((1, th), lambda i, k: (0, k), **w_kwargs),          # b1 chunk
        pl.BlockSpec((th, D), lambda i, k: (k, 0), **w_kwargs),          # W2 chunk
        pl.BlockSpec((1, D), lambda i, k: (0, 0), pipeline_mode=single),  # b2
        pl.BlockSpec((1, D), lambda i, k: (0, 0), pipeline_mode=single),  # gamma
        pl.BlockSpec((1, D), lambda i, k: (0, 0), pipeline_mode=single),  # beta
    ]

    weight_passes = 1 if k_tiles == 1 else n_row_tiles
    cost = pl.CostEstimate(
        flops=4 * rows * D * H + 10 * rows * D,
        transcendentals=rows,  # one rsqrt per row in the LN epilogue
        bytes_accessed=rows * D * (isz + osz)
                       + weight_passes * (2 * D * H + H + 3 * D) * wsz,
    )

    out = pl.pallas_call(
        ffn_kernel,
        out_shape=jax.ShapeDtypeStruct((rows, D), x.dtype),
        grid_spec=pltpu.PrefetchScalarGridSpec(
            num_scalar_prefetch=0,
            grid=(n_row_tiles, k_tiles),
            in_specs=in_specs,
            out_specs=pl.BlockSpec((tm, D), lambda i, k: (i, 0)),
            scratch_shapes=[pltpu.VMEM((tm, D), jnp.float32)],
        ),
        compiler_params=pltpu.CompilerParams(
            dimension_semantics=("parallel", "arbitrary"),
            vmem_limit_bytes=vmem_limit,
        ),
        cost_estimate=cost,
    )(x2, w1, b1.reshape(1, H), w2, b2.reshape(1, D),
      gamma.reshape(1, D), beta.reshape(1, D))

    return out.reshape(B, S, D)


def init_params(key, model_dim, hidden_dim, dtype=jnp.float32):
    k1, k2, k3, k4 = jax.random.split(key, 4)
    # Deterministic synthetic init (uniform ~ nn.Linear's kaiming-uniform scale).
    lim1 = 1.0 / (model_dim ** 0.5)
    lim2 = 1.0 / (hidden_dim ** 0.5)
    w1 = jax.random.uniform(k1, (model_dim, hidden_dim), dtype, -lim1, lim1)
    b1 = jax.random.uniform(k2, (hidden_dim,), dtype, -lim1, lim1)
    w2 = jax.random.uniform(k3, (hidden_dim, model_dim), dtype, -lim2, lim2)
    b2 = jax.random.uniform(k4, (model_dim,), dtype, -lim2, lim2)
    gamma = jnp.ones((model_dim,), dtype)   # LayerNorm weight init
    beta = jnp.zeros((model_dim,), dtype)   # LayerNorm bias init
    return w1, b1, w2, b2, gamma, beta


def reference(x, w1, b1, w2, b2, gamma, beta):
    h = jnp.maximum(x @ w1 + b1, 0.0)
    y = h @ w2 + b2
    r = x + y
    mean = jnp.mean(r, axis=-1, keepdims=True)
    var = jnp.mean((r - mean) ** 2, axis=-1, keepdims=True)
    return (r - mean) * lax.rsqrt(var + LN_EPS) * gamma + beta


if __name__ == "__main__":
    model_dim, hidden_dim = 256, 1024   # module defaults

    key = jax.random.PRNGKey(0)
    kx1, kx2, kx3, kp = jax.random.split(key, 4)
    params = init_params(kp, model_dim, hidden_dim)

    # Case 1: small shape (rows=16 -> tm clamps to 8, 2 row tiles, whole-H resident,
    # single-buffered constant weights).
    x1 = jax.random.normal(kx1, (2, 8, model_dim), jnp.float32)
    out1 = jax.block_until_ready(feed_forward(x1, *params))
    ref1 = reference(x1, *params)
    assert out1.shape == x1.shape and out1.dtype == x1.dtype
    assert jnp.allclose(out1, ref1, atol=2e-4, rtol=2e-4), "case 1 mismatch vs reference"

    # Case 2: ragged row count (100 rows -> tm=56, partial last block, no wrapper pad)
    # plus forced hidden-dim tiling (th=256 -> 4 accumulation steps on the k axis).
    x2 = jax.random.normal(kx2, (2, 50, model_dim), jnp.float32)
    out2 = jax.block_until_ready(feed_forward(x2, *params, th=256))
    ref2 = reference(x2, *params)
    assert out2.shape == x2.shape and out2.dtype == x2.dtype
    assert jnp.allclose(out2, ref2, atol=2e-4, rtol=2e-4), "case 2 mismatch vs reference"

    # Case 3: bf16 operands (native MXU rate, halved weight footprint); f32 accumulation
    # and f32 LayerNorm epilogue keep the result close to the f32 reference.
    bf16_params = init_params(kp, model_dim, hidden_dim, dtype=jnp.bfloat16)
    x3 = jax.random.normal(kx3, (4, 128, model_dim), jnp.float32).astype(jnp.bfloat16)
    out3 = jax.block_until_ready(feed_forward(x3, *bf16_params))
    ref3 = reference(x3.astype(jnp.float32),
                     *[p.astype(jnp.float32) for p in bf16_params])
    assert out3.shape == x3.shape and out3.dtype == x3.dtype
    assert jnp.allclose(out3.astype(jnp.float32), ref3, atol=1e-1, rtol=1e-1), \
        "case 3 (bf16) mismatch vs reference"

    print("KERNEL_OK")
</pallas_src>

<mosaic_0001>
module attributes {stable_mosaic.version = 11 : i64} {
  func.func @ffn_kernel(%arg0: i32, %arg1: i32, %arg2: memref<8x256xf32, #tpu.memory_space<vmem>>, %arg3: memref<256x1024xf32, #tpu.memory_space<vmem>>, %arg4: memref<1x1024xf32, #tpu.memory_space<vmem>>, %arg5: memref<1024x256xf32, #tpu.memory_space<vmem>>, %arg6: memref<1x256xf32, #tpu.memory_space<vmem>>, %arg7: memref<1x256xf32, #tpu.memory_space<vmem>>, %arg8: memref<1x256xf32, #tpu.memory_space<vmem>>, %arg9: memref<8x256xf32, #tpu.memory_space<vmem>>, %arg10: memref<8x256xf32, #tpu.memory_space<vmem>>) attributes {dimension_semantics = [#tpu.dimension_semantics<parallel>, #tpu.dimension_semantics<arbitrary>], iteration_bounds = array<i64: 2, 1>, scalar_prefetch = 0 : i64, scratch_operands = 1 : i64, tpu.core_type = #tpu.core_type<tc>, window_params = [{transform_indices = @transform_0, window_bounds = array<i64: 8, 256>}, {pipeline_mode = #tpu.pipeline_mode<synchronous>, transform_indices = @transform_1, window_bounds = array<i64: 256, 1024>}, {pipeline_mode = #tpu.pipeline_mode<synchronous>, transform_indices = @transform_2, window_bounds = array<i64: 1, 1024>}, {pipeline_mode = #tpu.pipeline_mode<synchronous>, transform_indices = @transform_3, window_bounds = array<i64: 1024, 256>}, {pipeline_mode = #tpu.pipeline_mode<synchronous>, transform_indices = @transform_4, window_bounds = array<i64: 1, 256>}, {pipeline_mode = #tpu.pipeline_mode<synchronous>, transform_indices = @transform_5, window_bounds = array<i64: 1, 256>}, {pipeline_mode = #tpu.pipeline_mode<synchronous>, transform_indices = @transform_6, window_bounds = array<i64: 1, 256>}, {transform_indices = @transform_7, window_bounds = array<i64: 8, 256>}]} {
    %c0_i32 = arith.constant 0 : i32
    %0 = arith.cmpi eq, %arg1, %c0_i32 : i32
    %1 = arith.extui %0 : i1 to i32
    %c0_i32_0 = arith.constant 0 : i32
    %2 = arith.cmpi ne, %1, %c0_i32_0 : i32
    scf.if %2 {
      %cst_16 = arith.constant 0.000000e+00 : f32
      %19 = vector.broadcast %cst_16 : f32 to vector<8x256xf32>
      %c0_17 = arith.constant 0 : index
      %c0_18 = arith.constant 0 : index
      %20 = vector.load %arg10[%c0_17, %c0_18] : memref<8x256xf32, #tpu.memory_space<vmem>>, vector<8x256xf32>
      tpu.vector_store %arg10[%c0_17, %c0_18], %19 {strides = array<i32>} : memref<8x256xf32, #tpu.memory_space<vmem>>, vector<8x256xf32>,
    } else {
    }
    %c0 = arith.constant 0 : index
    %c0_1 = arith.constant 0 : index
    %3 = vector.load %arg2[%c0, %c0_1] : memref<8x256xf32, #tpu.memory_space<vmem>>, vector<8x256xf32>
    %c0_2 = arith.constant 0 : index
    %c0_3 = arith.constant 0 : index
    %4 = vector.load %arg3[%c0_2, %c0_3] : memref<256x1024xf32, #tpu.memory_space<vmem>>, vector<256x1024xf32>
    %cst = arith.constant dense<0.000000e+00> : vector<8x1024xf32>
    %5 = tpu.matmul %3, %4, %cst {dimension_numbers = #tpu.dot_dimension_numbers<[1], [0], [0], [1], [0, 0, 1, 1], [], []>} : vector<8x256xf32>, vector<256x1024xf32>, vector<8x1024xf32> -> vector<8x1024xf32>
    %c0_4 = arith.constant 0 : index
    %c0_5 = arith.constant 0 : index
    %6 = vector.load %arg4[%c0_4, %c0_5] : memref<1x1024xf32, #tpu.memory_space<vmem>>, vector<1x1024xf32>
    %7 = vector.broadcast %6 : vector<1x1024xf32> to vector<8x1024xf32>
    %8 = arith.addf %5, %7 : vector<8x1024xf32>
    %cst_6 = arith.constant 0.000000e+00 : f32
    %9 = vector.broadcast %cst_6 : f32 to vector<8x1024xf32>
    %10 = arith.maximumf %8, %9 : vector<8x1024xf32>
    %c0_7 = arith.constant 0 : index
    %c0_8 = arith.constant 0 : index
    %11 = vector.load %arg10[%c0_7, %c0_8] : memref<8x256xf32, #tpu.memory_space<vmem>>, vector<8x256xf32>
    %c0_9 = arith.constant 0 : index
    %c0_10 = arith.constant 0 : index
    %12 = vector.load %arg5[%c0_9, %c0_10] : memref<1024x256xf32, #tpu.memory_space<vmem>>, vector<1024x256xf32>
    %cst_11 = arith.constant dense<0.000000e+00> : vector<8x256xf32>
    %13 = tpu.matmul %10, %12, %cst_11 {dimension_numbers = #tpu.dot_dimension_numbers<[1], [0], [0], [1], [0, 0, 1, 1], [], []>} : vector<8x1024xf32>, vector<1024x256xf32>, vector<8x256xf32> -> vector<8x256xf32>
    %14 = arith.addf %11, %13 : vector<8x256xf32>
    %c0_12 = arith.constant 0 : index
    %c0_13 = arith.constant 0 : index
    %15 = vector.load %arg10[%c0_12, %c0_13] : memref<8x256xf32, #tpu.memory_space<vmem>>, vector<8x256xf32>
    tpu.vector_store %arg10[%c0_12, %c0_13], %14 {strides = array<i32>} : memref<8x256xf32, #tpu.memory_space<vmem>>, vector<8x256xf32>,
    %c0_i32_14 = arith.constant 0 : i32
    %16 = arith.cmpi eq, %arg1, %c0_i32_14 : i32
    %17 = arith.extui %16 : i1 to i32
    %c0_i32_15 = arith.constant 0 : i32
    %18 = arith.cmpi ne, %17, %c0_i32_15 : i32
    scf.if %18 {
      %c0_16 = arith.constant 0 : index
      %c0_17 = arith.constant 0 : index
      %19 = vector.load %arg6[%c0_16, %c0_17] : memref<1x256xf32, #tpu.memory_space<vmem>>, vector<1x256xf32>
      %c0_18 = arith.constant 0 : index
      %c0_19 = arith.constant 0 : index
      %20 = vector.load %arg7[%c0_18, %c0_19] : memref<1x256xf32, #tpu.memory_space<vmem>>, vector<1x256xf32>
      %c0_20 = arith.constant 0 : index
      %c0_21 = arith.constant 0 : index
      %21 = vector.load %arg8[%c0_20, %c0_21] : memref<1x256xf32, #tpu.memory_space<vmem>>, vector<1x256xf32>
      %c0_22 = arith.constant 0 : index
      %c0_23 = arith.constant 0 : index
      %22 = vector.load %arg10[%c0_22, %c0_23] : memref<8x256xf32, #tpu.memory_space<vmem>>, vector<8x256xf32>
      %23 = arith.addf %3, %22 : vector<8x256xf32>
      %24 = vector.broadcast %19 : vector<1x256xf32> to vector<8x256xf32>
      %25 = arith.addf %23, %24 : vector<8x256xf32>
      %cst_24 = arith.constant dense<0.000000e+00> : vector<8xf32>
      %26 = vector.multi_reduction <add>, %25, %cst_24 [1] : vector<8x256xf32> to vector<8xf32>
      %27 = vector.shape_cast %26 : vector<8xf32> to vector<8x1xf32>
      %cst_25 = arith.constant 2.560000e+02 : f32
      %28 = vector.broadcast %cst_25 : f32 to vector<8x1xf32>
      %29 = arith.divf %27, %28 : vector<8x1xf32>
      %30 = vector.broadcast %29 : vector<8x1xf32> to vector<8x256xf32>
      %31 = arith.subf %25, %30 : vector<8x256xf32>
      %32 = arith.mulf %31, %31 : vector<8x256xf32>
      %cst_26 = arith.constant dense<0.000000e+00> : vector<8xf32>
      %33 = vector.multi_reduction <add>, %32, %cst_26 [1] : vector<8x256xf32> to vector<8xf32>
      %34 = vector.shape_cast %33 : vector<8xf32> to vector<8x1xf32>
      %cst_27 = arith.constant 2.560000e+02 : f32
      %35 = vector.broadcast %cst_27 : f32 to vector<8x1xf32>
      %36 = arith.divf %34, %35 : vector<8x1xf32>
      %cst_28 = arith.constant 9.99999974E-6 : f32
      %37 = vector.broadcast %cst_28 : f32 to vector<8x1xf32>
      %38 = arith.addf %36, %37 : vector<8x1xf32>
      %39 = math.rsqrt %38 : vector<8x1xf32>
      %40 = vector.broadcast %39 : vector<8x1xf32> to vector<8x256xf32>
      %41 = arith.mulf %31, %40 : vector<8x256xf32>
      %42 = vector.broadcast %20 : vector<1x256xf32> to vector<8x256xf32>
      %43 = arith.mulf %41, %42 : vector<8x256xf32>
      %44 = vector.broadcast %21 : vector<1x256xf32> to vector<8x256xf32>
      %45 = arith.addf %43, %44 : vector<8x256xf32>
      %c0_29 = arith.constant 0 : index
      %c0_30 = arith.constant 0 : index
      %46 = vector.load %arg9[%c0_29, %c0_30] : memref<8x256xf32, #tpu.memory_space<vmem>>, vector<8x256xf32>
      tpu.vector_store %arg9[%c0_29, %c0_30], %45 {strides = array<i32>} : memref<8x256xf32, #tpu.memory_space<vmem>>, vector<8x256xf32>,
    } else {
    }
    return
  }
  func.func @transform_0(%arg0: i32, %arg1: i32) -> (i32, i32) {
    %c0_i32 = arith.constant 0 : i32
    %c0_i32_0 = arith.constant 0 : i32
    return %arg0, %c0_i32 : i32, i32
  }
  func.func @transform_1(%arg0: i32, %arg1: i32) -> (i32, i32) {
    %c0_i32 = arith.constant 0 : i32
    %c0_i32_0 = arith.constant 0 : i32
    return %c0_i32, %arg1 : i32, i32
  }
  func.func @transform_2(%arg0: i32, %arg1: i32) -> (i32, i32) {
    %c0_i32 = arith.constant 0 : i32
    %c0_i32_0 = arith.constant 0 : i32
    return %c0_i32, %arg1 : i32, i32
  }
  func.func @transform_3(%arg0: i32, %arg1: i32) -> (i32, i32) {
    %c0_i32 = arith.constant 0 : i32
    %c0_i32_0 = arith.constant 0 : i32
    return %arg1, %c0_i32 : i32, i32
  }
  func.func @transform_4(%arg0: i32, %arg1: i32) -> (i32, i32) {
    %c0_i32 = arith.constant 0 : i32
    %c0_i32_0 = arith.constant 0 : i32
    %c0_i32_1 = arith.constant 0 : i32
    return %c0_i32, %c0_i32_0 : i32, i32
  }
  func.func @transform_5(%arg0: i32, %arg1: i32) -> (i32, i32) {
    %c0_i32 = arith.constant 0 : i32
    %c0_i32_0 = arith.constant 0 : i32
    %c0_i32_1 = arith.constant 0 : i32
    return %c0_i32, %c0_i32_0 : i32, i32
  }
  func.func @transform_6(%arg0: i32, %arg1: i32) -> (i32, i32) {
    %c0_i32 = arith.constant 0 : i32
    %c0_i32_0 = arith.constant 0 : i32
    %c0_i32_1 = arith.constant 0 : i32
    return %c0_i32, %c0_i32_0 : i32, i32
  }
  func.func @transform_7(%arg0: i32, %arg1: i32) -> (i32, i32) {
    %c0_i32 = arith.constant 0 : i32
    %c0_i32_0 = arith.constant 0 : i32
    return %arg0, %c0_i32 : i32, i32
  }
}

</mosaic_0001>

<llo_original>
// kernel: tpu_custom_call.1
$region0: #{tpu_custom_call.1}
  #allocation0 [shape = 'u32[]', space=smem, size = 0x4, offset = 0x4, fixed_abs, tag = 'smem constant byte address 0x4 - core index']
  #allocation1 [shape = 'u32[72,128]{1,0:T(1,128)}', space=vmem, size = 0x9000, scoped, tag = 'internal scratch']
  #allocation2 [shape = 'f32[8,256]{1,0:T(8,128)}', space=vmem, size = 0x2000, scoped, tag = 'scratch operand']
  %s0 = inlined_call_operand.hbm [shape: f32[16,256], index: 0, kind: input, shape index: {}]
  %s1 = inlined_call_operand.hbm [shape: f32[256,1024], index: 1, kind: input, shape index: {}]
  %s2 = inlined_call_operand.hbm [shape: f32[1,1024], index: 2, kind: input, shape index: {}]
  %s3 = inlined_call_operand.hbm [shape: f32[1024,256], index: 3, kind: input, shape index: {}]
  %s4 = inlined_call_operand.vmem [shape: f32[1,256], index: 4, kind: input, shape index: {}]
  %s5 = inlined_call_operand.vmem [shape: f32[1,256], index: 5, kind: input, shape index: {}]
  %s6 = inlined_call_operand.hbm [shape: f32[1,256], index: 6, kind: input, shape index: {}]
  %s7 = inlined_call_operand.hbm [shape: f32[16,256], index: 7, kind: output, shape index: {}]
  %s8 = sld [smem:[#allocation0]]
  $region89: #{tpu_custom_call.1} parent=0
    _
  %s10 = ssub.s32 1, %s8
  %s11 = scalar_select 0, %s10, %s8
  $region1: #{tpu_custom_call.1} parent=0
    #allocation3 [shape = 'u8[16384]{0}', space=vmem, size = 0x4000, scoped, tag = 'input window, operand 0']
    #allocation4 [shape = 's32[2]{0}', space=sflag, size = 0x8, scoped, tag = 'scoped memory for tpu_custom_call.1']
    #allocation5 [shape = 's32[2]{0}', space=sflag, size = 0x8, scoped, tag = 'scoped memory for tpu_custom_call.1']
    #allocation6 [shape = 'u8[1048576]{0}', space=vmem, size = 0x100000, scoped, tag = 'input window, operand 1, single buffered']
    #allocation7 [shape = 's32[1]{0}', space=sflag, size = 0x4, scoped, tag = 'scoped memory for tpu_custom_call.1']
    #allocation8 [shape = 'u8[4096]{0}', space=vmem, size = 0x1000, scoped, tag = 'input window, operand 2, single buffered']
    #allocation9 [shape = 'u8[1048576]{0}', space=vmem, size = 0x100000, scoped, tag = 'input window, operand 3, single buffered']
    #allocation10 [shape = 's32[1]{0}', space=sflag, size = 0x4, scoped, tag = 'scoped memory for tpu_custom_call.1']
    #allocation11 [shape = 'u8[1024]{0}', space=vmem, size = 0x400, scoped, tag = 'input window, operand 6, single buffered']
    #allocation12 [shape = 'u8[16384]{0}', space=vmem, size = 0x4000, scoped, tag = 'output window, operand 0']
    %12 = vsyncpa [#allocation4], 0
    %s13 = scalar_lea.sflag [#allocation4], 1
    %14 = vsyncpa %s13, 0
    %15 = vsyncpa [#allocation7], 0
    %16 = vsyncpa [#allocation10], 0
    %17 = vsyncpa [#allocation5], 0
    %s18 = scalar_lea.sflag [#allocation5], 1
    %19 = vsyncpa %s18, 0
    loop: start=0, step=1, limit=4
    $region2: #{tpu_custom_call.1} parent=1 // loop_pre_header
      _
    $region3: #{tpu_custom_call.1} parent=1 // loop_header
      %s21 = sphi 0, %s25
      %p22 = scmp.ge.s32.totalorder %s21, 4
      %s28 = sphi 0, %s40
      %s29 = sphi 0, %s36
      %s30 = sphi 0, %s28
      %s31 = sphi 0, %s29
      %s32 = sphi 0, %s30
      %s33 = sphi 0, %s31
      %s43 = sphi 0, %s45
      %s46 = sphi 0, %s43
      %s47 = sphi 0, %s46
      %s63 = sphi 0, %s47
      %s69 = sphi 0, %s71
      %s72 = sphi 0, %s69
      %s73 = sphi 0, %s72
      %s89 = sphi 0, %s73
      %s95 = sphi 0, %s97
      %s98 = sphi 0, %s95
      %s99 = sphi 0, %s98
      %s115 = sphi 0, %s99
      %s121 = sphi 0, %s123
      %s124 = sphi 0, %s121
      %s125 = sphi 0, %s124
      %s141 = sphi 0, %s125
      %s145 = sphi 0, %s145
      %s147 = sphi 0, %s145
      %s148 = sphi 0, %s147
      %s162 = sphi 0, %s148
      %s166 = sphi 0, %s166
      %s168 = sphi 0, %s166
      %s169 = sphi 0, %s168
      %s183 = sphi 0, %s169
      %s187 = sphi 0, %s187
      %s189 = sphi 0, %s187
      %s190 = sphi 0, %s189
      %s204 = sphi 0, %s190
      %s210 = sphi 0, %s212
      %s213 = sphi 0, %s210
      %s214 = sphi 0, %s213
      %s230 = sphi 0, %s214
    $region4: #{tpu_custom_call.1} parent=1 // loop_header_branch
      %24 = sbr.rel (%p22) target = $region8
    $region5: #{tpu_custom_call.1} parent=1 // loop_body
      %s26 = ssub.s32 %s21, 1
      %s27 = ssub.s32 %s21, 2
      %s34 = sadd.s32 1, %s29
      %p35 = scmp.ge.s32.totalorder %s34, 1
      %s36 = scalar_select %p35, 0, %s34
      %s37 = sadd.s32 1, %s28
      %s38 = scalar_select %p35, %s37, %s28
      %p39 = scmp.ge.s32.totalorder %s38, 2
      %s40 = scalar_select %p39, 0, %s38
      %s41 = ssub.s32 %s28, %s40
      %p42 = scmp.eq.s32.totalorder %s41, 0
      %s44 = sadd.s32 %s43, 1
      %s45 = scalar_select %p42, %s43, %s44
      %p48 = pneg %p42
      %p49 = scmp.eq.s32.totalorder %s21, 1
      %p50 = por %p48, %p49
      %p51 = scmp.ne.s32.totalorder %s43, %s46
      %p52 = scmp.eq.s32.totalorder %s21, 0
      %p53 = por %p51, %p52
      %p54 = scmp.ne.s32.totalorder %s43, %s46
      %p55 = scmp.eq.s32.totalorder %s26, 1
      %p56 = por %p54, %p55
      %p57 = scmp.ne.s32.totalorder %s46, %s47
      %p58 = scmp.eq.s32.totalorder %s26, 0
      %p59 = por %p57, %p58
      %p60 = scmp.ne.s32.totalorder %s46, %s47
      %p61 = scmp.eq.s32.totalorder %s27, 1
      %p62 = por %p60, %p61
      %p64 = scmp.ne.s32.totalorder %s47, %s63
      %p65 = scmp.eq.s32.totalorder %s27, 0
      %p66 = por %p64, %p65
      %s67 = ssub.s32 %s29, %s36
      %p68 = scmp.eq.s32.totalorder %s67, 0
      %s70 = sadd.s32 %s69, 1
      %s71 = scalar_select %p68, %s69, %s70
      %p74 = pneg %p68
      %p75 = scmp.eq.s32.totalorder %s21, 1
      %p76 = por %p74, %p75
      %p77 = scmp.ne.s32.totalorder %s69, %s72
      %p78 = scmp.eq.s32.totalorder %s21, 0
      %p79 = por %p77, %p78
      %p80 = scmp.ne.s32.totalorder %s69, %s72
      %p81 = scmp.eq.s32.totalorder %s26, 1
      %p82 = por %p80, %p81
      %p83 = scmp.ne.s32.totalorder %s72, %s73
      %p84 = scmp.eq.s32.totalorder %s26, 0
      %p85 = por %p83, %p84
      %p86 = scmp.ne.s32.totalorder %s72, %s73
      %p87 = scmp.eq.s32.totalorder %s27, 1
      %p88 = por %p86, %p87
      %p90 = scmp.ne.s32.totalorder %s73, %s89
      %p91 = scmp.eq.s32.totalorder %s27, 0
      %p92 = por %p90, %p91
      %s93 = ssub.s32 %s29, %s36
      %p94 = scmp.eq.s32.totalorder %s93, 0
      %s96 = sadd.s32 %s95, 1
      %s97 = scalar_select %p94, %s95, %s96
      %p100 = pneg %p94
      %p101 = scmp.eq.s32.totalorder %s21, 1
      %p102 = por %p100, %p101
      %p103 = scmp.ne.s32.totalorder %s95, %s98
      %p104 = scmp.eq.s32.totalorder %s21, 0
      %p105 = por %p103, %p104
      %p106 = scmp.ne.s32.totalorder %s95, %s98
      %p107 = scmp.eq.s32.totalorder %s26, 1
      %p108 = por %p106, %p107
      %p109 = scmp.ne.s32.totalorder %s98, %s99
      %p110 = scmp.eq.s32.totalorder %s26, 0
      %p111 = por %p109, %p110
      %p112 = scmp.ne.s32.totalorder %s98, %s99
      %p113 = scmp.eq.s32.totalorder %s27, 1
      %p114 = por %p112, %p113
      %p116 = scmp.ne.s32.totalorder %s99, %s115
      %p117 = scmp.eq.s32.totalorder %s27, 0
      %p118 = por %p116, %p117
      %s119 = ssub.s32 %s29, %s36
      %p120 = scmp.eq.s32.totalorder %s119, 0
      %s122 = sadd.s32 %s121, 1
      %s123 = scalar_select %p120, %s121, %s122
      %p126 = pneg %p120
      %p127 = scmp.eq.s32.totalorder %s21, 1
      %p128 = por %p126, %p127
      %p129 = scmp.ne.s32.totalorder %s121, %s124
      %p130 = scmp.eq.s32.totalorder %s21, 0
      %p131 = por %p129, %p130
      %p132 = scmp.ne.s32.totalorder %s121, %s124
      %p133 = scmp.eq.s32.totalorder %s26, 1
      %p134 = por %p132, %p133
      %p135 = scmp.ne.s32.totalorder %s124, %s125
      %p136 = scmp.eq.s32.totalorder %s26, 0
      %p137 = por %p135, %p136
      %p138 = scmp.ne.s32.totalorder %s124, %s125
      %p139 = scmp.eq.s32.totalorder %s27, 1
      %p140 = por %p138, %p139
      %p142 = scmp.ne.s32.totalorder %s125, %s141
      %p143 = scmp.eq.s32.totalorder %s27, 0
      %p144 = por %p142, %p143
      %s146 = sadd.s32 %s145, 1
      %p149 = scmp.eq.s32.totalorder %s21, 1
      %p150 = scmp.ne.s32.totalorder %s145, %s147
      %p151 = scmp.eq.s32.totalorder %s21, 0
      %p152 = por %p150, %p151
      %p153 = scmp.ne.s32.totalorder %s145, %s147
      %p154 = scmp.eq.s32.totalorder %s26, 1
      %p155 = por %p153, %p154
      %p156 = scmp.ne.s32.totalorder %s147, %s148
      %p157 = scmp.eq.s32.totalorder %s26, 0
      %p158 = por %p156, %p157
      %p159 = scmp.ne.s32.totalorder %s147, %s148
      %p160 = scmp.eq.s32.totalorder %s27, 1
      %p161 = por %p159, %p160
      %p163 = scmp.ne.s32.totalorder %s148, %s162
      %p164 = scmp.eq.s32.totalorder %s27, 0
      %p165 = por %p163, %p164
      %s167 = sadd.s32 %s166, 1
      %p170 = scmp.eq.s32.totalorder %s21, 1
      %p171 = scmp.ne.s32.totalorder %s166, %s168
      %p172 = scmp.eq.s32.totalorder %s21, 0
      %p173 = por %p171, %p172
      %p174 = scmp.ne.s32.totalorder %s166, %s168
      %p175 = scmp.eq.s32.totalorder %s26, 1
      %p176 = por %p174, %p175
      %p177 = scmp.ne.s32.totalorder %s168, %s169
      %p178 = scmp.eq.s32.totalorder %s26, 0
      %p179 = por %p177, %p178
      %p180 = scmp.ne.s32.totalorder %s168, %s169
      %p181 = scmp.eq.s32.totalorder %s27, 1
      %p182 = por %p180, %p181
      %p184 = scmp.ne.s32.totalorder %s169, %s183
      %p185 = scmp.eq.s32.totalorder %s27, 0
      %p186 = por %p184, %p185
      %s188 = sadd.s32 %s187, 1
      %p191 = scmp.eq.s32.totalorder %s21, 1
      %p192 = scmp.ne.s32.totalorder %s187, %s189
      %p193 = scmp.eq.s32.totalorder %s21, 0
      %p194 = por %p192, %p193
      %p195 = scmp.ne.s32.totalorder %s187, %s189
      %p196 = scmp.eq.s32.totalorder %s26, 1
      %p197 = por %p195, %p196
      %p198 = scmp.ne.s32.totalorder %s189, %s190
      %p199 = scmp.eq.s32.totalorder %s26, 0
      %p200 = por %p198, %p199
      %p201 = scmp.ne.s32.totalorder %s189, %s190
      %p202 = scmp.eq.s32.totalorder %s27, 1
      %p203 = por %p201, %p202
      %p205 = scmp.ne.s32.totalorder %s190, %s204
      %p206 = scmp.eq.s32.totalorder %s27, 0
      %p207 = por %p205, %p206
      %s208 = ssub.s32 %s28, %s40
      %p209 = scmp.eq.s32.totalorder %s208, 0
      %s211 = sadd.s32 %s210, 1
      %s212 = scalar_select %p209, %s210, %s211
      %p215 = pneg %p209
      %p216 = scmp.eq.s32.totalorder %s21, 1
      %p217 = por %p215, %p216
      %p218 = scmp.ne.s32.totalorder %s210, %s213
      %p219 = scmp.eq.s32.totalorder %s21, 0
      %p220 = por %p218, %p219
      %p221 = scmp.ne.s32.totalorder %s210, %s213
      %p222 = scmp.eq.s32.totalorder %s26, 1
      %p223 = por %p221, %p222
      %p224 = scmp.ne.s32.totalorder %s213, %s214
      %p225 = scmp.eq.s32.totalorder %s26, 0
      %p226 = por %p224, %p225
      %p227 = scmp.ne.s32.totalorder %s213, %s214
      %p228 = scmp.eq.s32.totalorder %s27, 1
      %p229 = por %p227, %p228
      %p231 = scmp.ne.s32.totalorder %s214, %s230
      %p232 = scmp.eq.s32.totalorder %s27, 0
      %p233 = por %p231, %p232
      %p234 = scmp.le.s32.totalorder 1, %s21
      %p235 = scmp.lt.s32.totalorder %s21, 3
      %p236 = pnand %p234, %p235
      %p237 = pneg %p236
      // Predicated region
      $region9: #{tpu_custom_call.1} parent=5 // pred_check
        _
      $region10: #{tpu_custom_call.1} parent=5 // pred_check_branch
        %239 = sbr.rel (%p236) target = $region12
      $region11: #{tpu_custom_call.1} parent=5 // pred_region
        %s240 = ssub.s32 %s21, 1
        // Predicated region
        $region13: #{tpu_custom_call.1} parent=11 // pred_check
          %p241 = pneg %p85
        $region14: #{tpu_custom_call.1} parent=11 // pred_check_branch
          %243 = sbr.rel (%p241) target = $region16
        $region15: #{tpu_custom_call.1} parent=11 // pred_region
          %s244 = smul.u32 8, %s31
          %246 = vsyncadd [#allocation7], 0
          %s247 = smul.addr %s244, 8
          %s248 = scalar_lea.hbm %s1, %s247
          %s249 = sshll.u32 %s248, 4
          %s250 = int_to_ptr.hbm [resolvable:$true] %s249
          %s251 = sshll.u32 [#allocation6], 4
          %s252 = int_to_ptr.vmem [resolvable:$true] %s251
          %257 = dma.hbm_to_vmem [thread:$0]  %s250, 32768, %s252, [#allocation7], 1024, 1024, 64
        $region16: #{tpu_custom_call.1} parent=11 // pred_fallthru
          _
        // Predicated region
        $region17: #{tpu_custom_call.1} parent=11 // pred_check
          %p258 = pneg %p111
        $region18: #{tpu_custom_call.1} parent=11 // pred_check_branch
          %260 = sbr.rel (%p258) target = $region20
        $region19: #{tpu_custom_call.1} parent=11 // pred_region
          %s261 = smul.u32 8, %s31
          %263 = vsyncadd [#allocation7], 0
          %s264 = scalar_lea.hbm %s2, %s261
          %s266 = sshll.u32 %s264, 4
          %s267 = int_to_ptr.hbm [resolvable:$true] %s266
          %s268 = sshll.u32 [#allocation8], 4
          %s269 = int_to_ptr.vmem [resolvable:$true] %s268
          %271 = dma.hbm_to_vmem [thread:$0]  %s267, 128, %s269, [#allocation7]
        $region20: #{tpu_custom_call.1} parent=11 // pred_fallthru
          _
        // Predicated region
        $region21: #{tpu_custom_call.1} parent=11 // pred_check
          %p272 = pneg %p137
        $region22: #{tpu_custom_call.1} parent=11 // pred_check_branch
          %274 = sbr.rel (%p272) target = $region24
        $region23: #{tpu_custom_call.1} parent=11 // pred_region
          %s275 = smul.u32 128, %s31
          %277 = vsyncadd [#allocation10], 0
          %s278 = smul.addr %s275, 2
          %s279 = smul.addr %s278, 8
          %s280 = scalar_lea.hbm %s3, %s279
          %s281 = sshll.u32 %s280, 4
          %s282 = int_to_ptr.hbm [resolvable:$true] %s281
          %s283 = sshll.u32 [#allocation9], 4
          %s284 = int_to_ptr.vmem [resolvable:$true] %s283
          %289 = dma.hbm_to_vmem [thread:$0]  %s282, 32768, %s284, [#allocation10], 256, 256, 16
        $region24: #{tpu_custom_call.1} parent=11 // pred_fallthru
          _
        // Predicated region
        $region25: #{tpu_custom_call.1} parent=11 // pred_check
          %p290 = pneg %p158
        $region26: #{tpu_custom_call.1} parent=11 // pred_check_branch
          %292 = sbr.rel (%p290) target = $region28
        $region27: #{tpu_custom_call.1} parent=11 // pred_region
          _
        $region28: #{tpu_custom_call.1} parent=11 // pred_fallthru
          _
        // Predicated region
        $region29: #{tpu_custom_call.1} parent=11 // pred_check
          %p293 = pneg %p179
        $region30: #{tpu_custom_call.1} parent=11 // pred_check_branch
          %295 = sbr.rel (%p293) target = $region32
        $region31: #{tpu_custom_call.1} parent=11 // pred_region
          _
        $region32: #{tpu_custom_call.1} parent=11 // pred_fallthru
          _
        // Predicated region
        $region33: #{tpu_custom_call.1} parent=11 // pred_check
          %p296 = pneg %p200
        $region34: #{tpu_custom_call.1} parent=11 // pred_check_branch
          %298 = sbr.rel (%p296) target = $region36
        $region35: #{tpu_custom_call.1} parent=11 // pred_region
          %300 = vsyncadd [#allocation10], 0
          %s302 = sshll.u32 %s6, 4
          %s303 = int_to_ptr.hbm [resolvable:$true] %s302
          %s304 = sshll.u32 [#allocation11], 4
          %s305 = int_to_ptr.vmem [resolvable:$true] %s304
          %307 = dma.hbm_to_vmem [thread:$0]  %s303, 32, %s305, [#allocation10]
        $region36: #{tpu_custom_call.1} parent=11 // pred_fallthru
          _
      $region12: #{tpu_custom_call.1} parent=5 // pred_fallthru
        _
      %p308 = scmp.lt.s32.totalorder %s21, 2
      // Predicated region
      $region37: #{tpu_custom_call.1} parent=5 // pred_check
        %p309 = pneg %p308
      $region38: #{tpu_custom_call.1} parent=5 // pred_check_branch
        %311 = sbr.rel (%p309) target = $region40
      $region39: #{tpu_custom_call.1} parent=5 // pred_region
        // Predicated region
        $region41: #{tpu_custom_call.1} parent=39 // pred_check
          %p312 = pneg %p53
        $region42: #{tpu_custom_call.1} parent=39 // pred_check_branch
          %314 = sbr.rel (%p312) target = $region44
        $region43: #{tpu_custom_call.1} parent=39 // pred_region
          %s315 = sand.u32 %s43, 1
          %s316 = scalar_lea.sflag [#allocation4], %s315
          %s317 = sand.u32 %s43, 1
          %s318 = smul.addr %s317, 16
          %s319 = scalar_lea.vmem [#allocation3], %s318
          %321 = vsyncadd %s316, 0
          %s322 = smul.addr %s28, 2
          %s323 = smul.addr %s322, 8
          %s324 = scalar_lea.hbm %s0, %s323
          %s326 = sshll.u32 %s324, 4
          %s327 = int_to_ptr.hbm [resolvable:$true] %s326
          %s328 = sshll.u32 %s319, 4
          %s329 = int_to_ptr.vmem [resolvable:$true] %s328
          %331 = dma.hbm_to_vmem [thread:$0]  %s327, 256, %s329, %s316
        $region44: #{tpu_custom_call.1} parent=39 // pred_fallthru
          _
      $region40: #{tpu_custom_call.1} parent=5 // pred_fallthru
        _
      %p332 = scmp.le.s32.totalorder 1, %s21
      %p333 = scmp.lt.s32.totalorder %s21, 3
      %p334 = pnand %p332, %p333
      %p335 = pneg %p334
      // Predicated region
      $region45: #{tpu_custom_call.1} parent=5 // pred_check
        _
      $region46: #{tpu_custom_call.1} parent=5 // pred_check_branch
        %337 = sbr.rel (%p334) target = $region48
      $region47: #{tpu_custom_call.1} parent=5 // pred_region
        %s338 = ssub.s32 %s21, 1
        %s339 = sand.u32 %s46, 1
        %s340 = scalar_lea.sflag [#allocation4], %s339
        %s341 = sand.u32 %s46, 1
        %s342 = smul.addr %s341, 16
        %s343 = scalar_lea.vmem [#allocation3], %s342
        // Predicated region
        $region49: #{tpu_custom_call.1} parent=47 // pred_check
          %p344 = pneg %p59
        $region50: #{tpu_custom_call.1} parent=47 // pred_check_branch
          %346 = sbr.rel (%p344) target = $region52
        $region51: #{tpu_custom_call.1} parent=47 // pred_region
          %348 = dma.done %s340, 256
        $region52: #{tpu_custom_call.1} parent=47 // pred_fallthru
          _
        // Predicated region
        $region53: #{tpu_custom_call.1} parent=47 // pred_check
          %p349 = pneg %p85
        $region54: #{tpu_custom_call.1} parent=47 // pred_check_branch
          %351 = sbr.rel (%p349) target = $region56
        $region55: #{tpu_custom_call.1} parent=47 // pred_region
          %353 = dma.done [#allocation7], 32768
        $region56: #{tpu_custom_call.1} parent=47 // pred_fallthru
          _
        // Predicated region
        $region57: #{tpu_custom_call.1} parent=47 // pred_check
          %p354 = pneg %p111
        $region58: #{tpu_custom_call.1} parent=47 // pred_check_branch
          %356 = sbr.rel (%p354) target = $region60
        $region59: #{tpu_custom_call.1} parent=47 // pred_region
          %358 = dma.done [#allocation7], 128
        $region60: #{tpu_custom_call.1} parent=47 // pred_fallthru
          _
        // Predicated region
        $region61: #{tpu_custom_call.1} parent=47 // pred_check
          %p359 = pneg %p137
        $region62: #{tpu_custom_call.1} parent=47 // pred_check_branch
          %361 = sbr.rel (%p359) target = $region64
        $region63: #{tpu_custom_call.1} parent=47 // pred_region
          %363 = dma.done [#allocation10], 32768
        $region64: #{tpu_custom_call.1} parent=47 // pred_fallthru
          _
        // Predicated region
        $region65: #{tpu_custom_call.1} parent=47 // pred_check
          %p364 = pneg %p200
        $region66: #{tpu_custom_call.1} parent=47 // pred_check_branch
          %366 = sbr.rel (%p364) target = $region68
        $region67: #{tpu_custom_call.1} parent=47 // pred_region
          %368 = dma.done [#allocation10], 32
        $region68: #{tpu_custom_call.1} parent=47 // pred_fallthru
          _
        %s369 = sand.u32 %s46, 1
        %s370 = scalar_lea.sflag [#allocation4], %s369
        %s371 = sand.u32 %s46, 1
        %s372 = smul.addr %s371, 16
        %s373 = scalar_lea.vmem [#allocation3], %s372
        %p374 = pneg %p59
        %p375 = pneg %p56
        %p376 = pneg %p85
        %p377 = pneg %p82
        %p378 = pneg %p111
        %p379 = pneg %p108
        %p380 = pneg %p137
        %p381 = pneg %p134
        %p382 = pneg %p158
        %p383 = pneg %p155
        %p384 = pneg %p179
        %p385 = pneg %p176
        %p386 = pneg %p200
        %p387 = pneg %p197
        %p388 = pneg %p226
        %p389 = pneg %p223
        %s390 = sand.u32 %s213, 1
        %s391 = scalar_lea.sflag [#allocation5], %s390
        %s392 = sand.u32 %s213, 1
        %s393 = smul.addr %s392, 16
        %s394 = scalar_lea.vmem [#allocation12], %s393
        %s395 = smul.u32 8, %s31
        %s396 = smul.u32 8, %s31
        %s397 = smul.u32 128, %s31
        %p398 = scmp.eq.s32.totalorder %s31, 0
        // Predicated region
        $region69: #{tpu_custom_call.1} parent=47 // pred_check
          %p399 = pneg %p398
        $region70: #{tpu_custom_call.1} parent=47 // pred_check_branch
          %401 = sbr.rel (%p399) target = $region72
        $region71: #{tpu_custom_call.1} parent=47 // pred_region
          %402 = vst [vmem:[#allocation2] sm:$0xff] 0.0
          %403 = vst [vmem:[#allocation2 + $0x8] sm:$0xff] 0.0
        $region72: #{tpu_custom_call.1} parent=47 // pred_fallthru
          _
        %v404 = vld [vmem:[%s343] sm:$0xff]
        %v405 = vld [vmem:[%s343 + $0x8] sm:$0xff]
        %v406 = vld [vmem:[#allocation6] sm:$0xff]
        %v407 = vld [vmem:[#allocation6 + $0x8] sm:$0xff]
        %v408 = vld [vmem:[#allocation6 + $0x10] sm:$0xff]
        %v409 = vld [vmem:[#allocation6 + $0x18] sm:$0xff]
        %v410 = vld [vmem:[#allocation6 + $0x20] sm:$0xff]
        %v411 = vld [vmem:[#allocation6 + $0x28] sm:$0xff]
        %v412 = vld [vmem:[#allocation6 + $0x30] sm:$0xff]
        %v413 = vld [vmem:[#allocation6 + $0x38] sm:$0xff]
        %v414 = vld [vmem:[#allocation6 + $0x40] sm:$0xff]
        %v415 = vld [vmem:[#allocation6 + $0x48] sm:$0xff]
        %v416 = vld [vmem:[#allocation6 + $0x50] sm:$0xff]
        %v417 = vld [vmem:[#allocation6 + $0x58] sm:$0xff]
        %v418 = vld [vmem:[#allocation6 + $0x60] sm:$0xff]
        %v419 = vld [vmem:[#allocation6 + $0x68] sm:$0xff]
        %v420 = vld [vmem:[#allocation6 + $0x70] sm:$0xff]
        %v421 = vld [vmem:[#allocation6 + $0x78] sm:$0xff]
        %v422 = vld [vmem:[#allocation6 + $0x80] sm:$0xff]
        %v423 = vld [vmem:[#allocation6 + $0x88] sm:$0xff]
        %v424 = vld [vmem:[#allocation6 + $0x90] sm:$0xff]
        %v425 = vld [vmem:[#allocation6 + $0x98] sm:$0xff]
        %v426 = vld [vmem:[#allocation6 + $0xa0] sm:$0xff]
        %v427 = vld [vmem:[#allocation6 + $0xa8] sm:$0xff]
        %v428 = vld [vmem:[#allocation6 + $0xb0] sm:$0xff]
        %v429 = vld [vmem:[#allocation6 + $0xb8] sm:$0xff]
        %v430 = vld [vmem:[#allocation6 + $0xc0] sm:$0xff]
        %v431 = vld [vmem:[#allocation6 + $0xc8] sm:$0xff]
        %v432 = vld [vmem:[#allocation6 + $0xd0] sm:$0xff]
        %v433 = vld [vmem:[#allocation6 + $0xd8] sm:$0xff]
        %v434 = vld [vmem:[#allocation6 + $0xe0] sm:$0xff]
        %v435 = vld [vmem:[#allocation6 + $0xe8] sm:$0xff]
        %v436 = vld [vmem:[#allocation6 + $0xf0] sm:$0xff]
        %v437 = vld [vmem:[#allocation6 + $0xf8] sm:$0xff]
        %v438 = vld [vmem:[#allocation6 + $0x100] sm:$0xff]
        %v439 = vld [vmem:[#allocation6 + $0x108] sm:$0xff]
        %v440 = vld [vmem:[#allocation6 + $0x110] sm:$0xff]
        %v441 = vld [vmem:[#allocation6 + $0x118] sm:$0xff]
        %v442 = vld [vmem:[#allocation6 + $0x120] sm:$0xff]
        %v443 = vld [vmem:[#allocation6 + $0x128] sm:$0xff]
        %v444 = vld [vmem:[#allocation6 + $0x130] sm:$0xff]
        %v445 = vld [vmem:[#allocation6 + $0x138] sm:$0xff]
        %v446 = vld [vmem:[#allocation6 + $0x140] sm:$0xff]
        %v447 = vld [vmem:[#allocation6 + $0x148] sm:$0xff]
        %v448 = vld [vmem:[#allocation6 + $0x150] sm:$0xff]
        %v449 = vld [vmem:[#allocation6 + $0x158] sm:$0xff]
        %v450 = vld [vmem:[#allocation6 + $0x160] sm:$0xff]
        %v451 = vld [vmem:[#allocation6 + $0x168] sm:$0xff]
        %v452 = vld [vmem:[#allocation6 + $0x170] sm:$0xff]
        %v453 = vld [vmem:[#allocation6 + $0x178] sm:$0xff]
        %v454 = vld [vmem:[#allocation6 + $0x180] sm:$0xff]
        %v455 = vld [vmem:[#allocation6 + $0x188] sm:$0xff]
        %v456 = vld [vmem:[#allocation6 + $0x190] sm:$0xff]
        %v457 = vld [vmem:[#allocation6 + $0x198] sm:$0xff]
        %v458 = vld [vmem:[#allocation6 + $0x1a0] sm:$0xff]
        %v459 = vld [vmem:[#allocation6 + $0x1a8] sm:$0xff]
        %v460 = vld [vmem:[#allocation6 + $0x1b0] sm:$0xff]
        %v461 = vld [vmem:[#allocation6 + $0x1b8] sm:$0xff]
        %v462 = vld [vmem:[#allocation6 + $0x1c0] sm:$0xff]
        %v463 = vld [vmem:[#allocation6 + $0x1c8] sm:$0xff]
        %v464 = vld [vmem:[#allocation6 + $0x1d0] sm:$0xff]
        %v465 = vld [vmem:[#allocation6 + $0x1d8] sm:$0xff]
        %v466 = vld [vmem:[#allocation6 + $0x1e0] sm:$0xff]
        %v467 = vld [vmem:[#allocation6 + $0x1e8] sm:$0xff]
        %v468 = vld [vmem:[#allocation6 + $0x1f0] sm:$0xff]
        %v469 = vld [vmem:[#allocation6 + $0x1f8] sm:$0xff]
        %v470 = vld [vmem:[#allocation6 + $0x200] sm:$0xff]
        %v471 = vld [vmem:[#allocation6 + $0x208] sm:$0xff]
        %v472 = vld [vmem:[#allocation6 + $0x210] sm:$0xff]
        %v473 = vld [vmem:[#allocation6 + $0x218] sm:$0xff]
        %v474 = vld [vmem:[#allocation6 + $0x220] sm:$0xff]
        %v475 = vld [vmem:[#allocation6 + $0x228] sm:$0xff]
        %v476 = vld [vmem:[#allocation6 + $0x230] sm:$0xff]
        %v477 = vld [vmem:[#allocation6 + $0x238] sm:$0xff]
        %v478 = vld [vmem:[#allocation6 + $0x240] sm:$0xff]
        %v479 = vld [vmem:[#allocation6 + $0x248] sm:$0xff]
        %v480 = vld [vmem:[#allocation6 + $0x250] sm:$0xff]
        %v481 = vld [vmem:[#allocation6 + $0x258] sm:$0xff]
        %v482 = vld [vmem:[#allocation6 + $0x260] sm:$0xff]
        %v483 = vld [vmem:[#allocation6 + $0x268] sm:$0xff]
        %v484 = vld [vmem:[#allocation6 + $0x270] sm:$0xff]
        %v485 = vld [vmem:[#allocation6 + $0x278] sm:$0xff]
        %v486 = vld [vmem:[#allocation6 + $0x280] sm:$0xff]
        %v487 = vld [vmem:[#allocation6 + $0x288] sm:$0xff]
        %v488 = vld [vmem:[#allocation6 + $0x290] sm:$0xff]
        %v489 = vld [vmem:[#allocation6 + $0x298] sm:$0xff]
        %v490 = vld [vmem:[#allocation6 + $0x2a0] sm:$0xff]
        %v491 = vld [vmem:[#allocation6 + $0x2a8] sm:$0xff]
        %v492 = vld [vmem:[#allocation6 + $0x2b0] sm:$0xff]
        %v493 = vld [vmem:[#allocation6 + $0x2b8] sm:$0xff]
        %v494 = vld [vmem:[#allocation6 + $0x2c0] sm:$0xff]
        %v495 = vld [vmem:[#allocation6 + $0x2c8] sm:$0xff]
        %v496 = vld [vmem:[#allocation6 + $0x2d0] sm:$0xff]
        %v497 = vld [vmem:[#allocation6 + $0x2d8] sm:$0xff]
        %v498 = vld [vmem:[#allocation6 + $0x2e0] sm:$0xff]
        %v499 = vld [vmem:[#allocation6 + $0x2e8] sm:$0xff]
        %v500 = vld [vmem:[#allocation6 + $0x2f0] sm:$0xff]
        %v501 = vld [vmem:[#allocation6 + $0x2f8] sm:$0xff]
        %v502 = vld [vmem:[#allocation6 + $0x300] sm:$0xff]
        %v503 = vld [vmem:[#allocation6 + $0x308] sm:$0xff]
        %v504 = vld [vmem:[#allocation6 + $0x310] sm:$0xff]
        %v505 = vld [vmem:[#allocation6 + $0x318] sm:$0xff]
        %v506 = vld [vmem:[#allocation6 + $0x320] sm:$0xff]
        %v507 = vld [vmem:[#allocation6 + $0x328] sm:$0xff]
        %v508 = vld [vmem:[#allocation6 + $0x330] sm:$0xff]
        %v509 = vld [vmem:[#allocation6 + $0x338] sm:$0xff]
        %v510 = vld [vmem:[#allocation6 + $0x340] sm:$0xff]
        %v511 = vld [vmem:[#allocation6 + $0x348] sm:$0xff]
        %v512 = vld [vmem:[#allocation6 + $0x350] sm:$0xff]
        %v513 = vld [vmem:[#allocation6 + $0x358] sm:$0xff]
        %v514 = vld [vmem:[#allocation6 + $0x360] sm:$0xff]
        %v515 = vld [vmem:[#allocation6 + $0x368] sm:$0xff]
        %v516 = vld [vmem:[#allocation6 + $0x370] sm:$0xff]
        %v517 = vld [vmem:[#allocation6 + $0x378] sm:$0xff]
        %v518 = vld [vmem:[#allocation6 + $0x380] sm:$0xff]
        %v519 = vld [vmem:[#allocation6 + $0x388] sm:$0xff]
        %v520 = vld [vmem:[#allocation6 + $0x390] sm:$0xff]
        %v521 = vld [vmem:[#allocation6 + $0x398] sm:$0xff]
        %v522 = vld [vmem:[#allocation6 + $0x3a0] sm:$0xff]
        %v523 = vld [vmem:[#allocation6 + $0x3a8] sm:$0xff]
        %v524 = vld [vmem:[#allocation6 + $0x3b0] sm:$0xff]
        %v525 = vld [vmem:[#allocation6 + $0x3b8] sm:$0xff]
        %v526 = vld [vmem:[#allocation6 + $0x3c0] sm:$0xff]
        %v527 = vld [vmem:[#allocation6 + $0x3c8] sm:$0xff]
        %v528 = vld [vmem:[#allocation6 + $0x3d0] sm:$0xff]
        %v529 = vld [vmem:[#allocation6 + $0x3d8] sm:$0xff]
        %v530 = vld [vmem:[#allocation6 + $0x3e0] sm:$0xff]
        %v531 = vld [vmem:[#allocation6 + $0x3e8] sm:$0xff]
        %v532 = vld [vmem:[#allocation6 + $0x3f0] sm:$0xff]
        %v533 = vld [vmem:[#allocation6 + $0x3f8] sm:$0xff]
        %v534 = vld [vmem:[#allocation6 + $0x400] sm:$0xff]
        %v535 = vld [vmem:[#allocation6 + $0x408] sm:$0xff]
        %v536 = vld [vmem:[#allocation6 + $0x410] sm:$0xff]
        %v537 = vld [vmem:[#allocation6 + $0x418] sm:$0xff]
        %v538 = vld [vmem:[#allocation6 + $0x420] sm:$0xff]
        %v539 = vld [vmem:[#allocation6 + $0x428] sm:$0xff]
        %v540 = vld [vmem:[#allocation6 + $0x430] sm:$0xff]
        %v541 = vld [vmem:[#allocation6 + $0x438] sm:$0xff]
        %v542 = vld [vmem:[#allocation6 + $0x440] sm:$0xff]
        %v543 = vld [vmem:[#allocation6 + $0x448] sm:$0xff]
        %v544 = vld [vmem:[#allocation6 + $0x450] sm:$0xff]
        %v545 = vld [vmem:[#allocation6 + $0x458] sm:$0xff]
        %v546 = vld [vmem:[#allocation6 + $0x460] sm:$0xff]
        %v547 = vld [vmem:[#allocation6 + $0x468] sm:$0xff]
        %v548 = vld [vmem:[#allocation6 + $0x470] sm:$0xff]
        %v549 = vld [vmem:[#allocation6 + $0x478] sm:$0xff]
        %v550 = vld [vmem:[#allocation6 + $0x480] sm:$0xff]
        %v551 = vld [vmem:[#allocation6 + $0x488] sm:$0xff]
        %v552 = vld [vmem:[#allocation6 + $0x490] sm:$0xff]
        %v553 = vld [vmem:[#allocation6 + $0x498] sm:$0xff]
        %v554 = vld [vmem:[#allocation6 + $0x4a0] sm:$0xff]
        %v555 = vld [vmem:[#allocation6 + $0x4a8] sm:$0xff]
        %v556 = vld [vmem:[#allocation6 + $0x4b0] sm:$0xff]
        %v557 = vld [vmem:[#allocation6 + $0x4b8] sm:$0xff]
        %v558 = vld [vmem:[#allocation6 + $0x4c0] sm:$0xff]
        %v559 = vld [vmem:[#allocation6 + $0x4c8] sm:$0xff]
        %v560 = vld [vmem:[#allocation6 + $0x4d0] sm:$0xff]
        %v561 = vld [vmem:[#allocation6 + $0x4d8] sm:$0xff]
        %v562 = vld [vmem:[#allocation6 + $0x4e0] sm:$0xff]
        %v563 = vld [vmem:[#allocation6 + $0x4e8] sm:$0xff]
        %v564 = vld [vmem:[#allocation6 + $0x4f0] sm:$0xff]
        %v565 = vld [vmem:[#allocation6 + $0x4f8] sm:$0xff]
        %v566 = vld [vmem:[#allocation6 + $0x500] sm:$0xff]
        %v567 = vld [vmem:[#allocation6 + $0x508] sm:$0xff]
        %v568 = vld [vmem:[#allocation6 + $0x510] sm:$0xff]
        %v569 = vld [vmem:[#allocation6 + $0x518] sm:$0xff]
        %v570 = vld [vmem:[#allocation6 + $0x520] sm:$0xff]
        %v571 = vld [vmem:[#allocation6 + $0x528] sm:$0xff]
        %v572 = vld [vmem:[#allocation6 + $0x530] sm:$0xff]
        %v573 = vld [vmem:[#allocation6 + $0x538] sm:$0xff]
        %v574 = vld [vmem:[#allocation6 + $0x540] sm:$0xff]
        %v575 = vld [vmem:[#allocation6 + $0x548] sm:$0xff]
        %v576 = vld [vmem:[#allocation6 + $0x550] sm:$0xff]
        %v577 = vld [vmem:[#allocation6 + $0x558] sm:$0xff]
        %v578 = vld [vmem:[#allocation6 + $0x560] sm:$0xff]
        %v579 = vld [vmem:[#allocation6 + $0x568] sm:$0xff]
        %v580 = vld [vmem:[#allocation6 + $0x570] sm:$0xff]
        %v581 = vld [vmem:[#allocation6 + $0x578] sm:$0xff]
        %v582 = vld [vmem:[#allocation6 + $0x580] sm:$0xff]
        %v583 = vld [vmem:[#allocation6 + $0x588] sm:$0xff]
        %v584 = vld [vmem:[#allocation6 + $0x590] sm:$0xff]
        %v585 = vld [vmem:[#allocation6 + $0x598] sm:$0xff]
        %v586 = vld [vmem:[#allocation6 + $0x5a0] sm:$0xff]
        %v587 = vld [vmem:[#allocation6 + $0x5a8] sm:$0xff]
        %v588 = vld [vmem:[#allocation6 + $0x5b0] sm:$0xff]
        %v589 = vld [vmem:[#allocation6 + $0x5b8] sm:$0xff]
        %v590 = vld [vmem:[#allocation6 + $0x5c0] sm:$0xff]
        %v591 = vld [vmem:[#allocation6 + $0x5c8] sm:$0xff]
        %v592 = vld [vmem:[#allocation6 + $0x5d0] sm:$0xff]
        %v593 = vld [vmem:[#allocation6 + $0x5d8] sm:$0xff]
        %v594 = vld [vmem:[#allocation6 + $0x5e0] sm:$0xff]
        %v595 = vld [vmem:[#allocation6 + $0x5e8] sm:$0xff]
        %v596 = vld [vmem:[#allocation6 + $0x5f0] sm:$0xff]
        %v597 = vld [vmem:[#allocation6 + $0x5f8] sm:$0xff]
        %v598 = vld [vmem:[#allocation6 + $0x600] sm:$0xff]
        %v599 = vld [vmem:[#allocation6 + $0x608] sm:$0xff]
        %v600 = vld [vmem:[#allocation6 + $0x610] sm:$0xff]
        %v601 = vld [vmem:[#allocation6 + $0x618] sm:$0xff]
        %v602 = vld [vmem:[#allocation6 + $0x620] sm:$0xff]
        %v603 = vld [vmem:[#allocation6 + $0x628] sm:$0xff]
        %v604 = vld [vmem:[#allocation6 + $0x630] sm:$0xff]
        %v605 = vld [vmem:[#allocation6 + $0x638] sm:$0xff]
        %v606 = vld [vmem:[#allocation6 + $0x640] sm:$0xff]
        %v607 = vld [vmem:[#allocation6 + $0x648] sm:$0xff]
        %v608 = vld [vmem:[#allocation6 + $0x650] sm:$0xff]
        %v609 = vld [vmem:[#allocation6 + $0x658] sm:$0xff]
        %v610 = vld [vmem:[#allocation6 + $0x660] sm:$0xff]
        %v611 = vld [vmem:[#allocation6 + $0x668] sm:$0xff]
        %v612 = vld [vmem:[#allocation6 + $0x670] sm:$0xff]
        %v613 = vld [vmem:[#allocation6 + $0x678] sm:$0xff]
        %v614 = vld [vmem:[#allocation6 + $0x680] sm:$0xff]
        %v615 = vld [vmem:[#allocation6 + $0x688] sm:$0xff]
        %v616 = vld [vmem:[#allocation6 + $0x690] sm:$0xff]
        %v617 = vld [vmem:[#allocation6 + $0x698] sm:$0xff]
        %v618 = vld [vmem:[#allocation6 + $0x6a0] sm:$0xff]
        %v619 = vld [vmem:[#allocation6 + $0x6a8] sm:$0xff]
        %v620 = vld [vmem:[#allocation6 + $0x6b0] sm:$0xff]
        %v621 = vld [vmem:[#allocation6 + $0x6b8] sm:$0xff]
        %v622 = vld [vmem:[#allocation6 + $0x6c0] sm:$0xff]
        %v623 = vld [vmem:[#allocation6 + $0x6c8] sm:$0xff]
        %v624 = vld [vmem:[#allocation6 + $0x6d0] sm:$0xff]
        %v625 = vld [vmem:[#allocation6 + $0x6d8] sm:$0xff]
        %v626 = vld [vmem:[#allocation6 + $0x6e0] sm:$0xff]
        %v627 = vld [vmem:[#allocation6 + $0x6e8] sm:$0xff]
        %v628 = vld [vmem:[#allocation6 + $0x6f0] sm:$0xff]
        %v629 = vld [vmem:[#allocation6 + $0x6f8] sm:$0xff]
        %v630 = vld [vmem:[#allocation6 + $0x700] sm:$0xff]
        %v631 = vld [vmem:[#allocation6 + $0x708] sm:$0xff]
        %v632 = vld [vmem:[#allocation6 + $0x710] sm:$0xff]
        %v633 = vld [vmem:[#allocation6 + $0x718] sm:$0xff]
        %v634 = vld [vmem:[#allocation6 + $0x720] sm:$0xff]
        %v635 = vld [vmem:[#allocation6 + $0x728] sm:$0xff]
        %v636 = vld [vmem:[#allocation6 + $0x730] sm:$0xff]
        %v637 = vld [vmem:[#allocation6 + $0x738] sm:$0xff]
        %v638 = vld [vmem:[#allocation6 + $0x740] sm:$0xff]
        %v639 = vld [vmem:[#allocation6 + $0x748] sm:$0xff]
        %v640 = vld [vmem:[#allocation6 + $0x750] sm:$0xff]
        %v641 = vld [vmem:[#allocation6 + $0x758] sm:$0xff]
        %v642 = vld [vmem:[#allocation6 + $0x760] sm:$0xff]
        %v643 = vld [vmem:[#allocation6 + $0x768] sm:$0xff]
        %v644 = vld [vmem:[#allocation6 + $0x770] sm:$0xff]
        %v645 = vld [vmem:[#allocation6 + $0x778] sm:$0xff]
        %v646 = vld [vmem:[#allocation6 + $0x780] sm:$0xff]
        %v647 = vld [vmem:[#allocation6 + $0x788] sm:$0xff]
        %v648 = vld [vmem:[#allocation6 + $0x790] sm:$0xff]
        %v649 = vld [vmem:[#allocation6 + $0x798] sm:$0xff]
        %v650 = vld [vmem:[#allocation6 + $0x7a0] sm:$0xff]
        %v651 = vld [vmem:[#allocation6 + $0x7a8] sm:$0xff]
        %v652 = vld [vmem:[#allocation6 + $0x7b0] sm:$0xff]
        %v653 = vld [vmem:[#allocation6 + $0x7b8] sm:$0xff]
        %v654 = vld [vmem:[#allocation6 + $0x7c0] sm:$0xff]
        %v655 = vld [vmem:[#allocation6 + $0x7c8] sm:$0xff]
        %v656 = vld [vmem:[#allocation6 + $0x7d0] sm:$0xff]
        %v657 = vld [vmem:[#allocation6 + $0x7d8] sm:$0xff]
        %v658 = vld [vmem:[#allocation6 + $0x7e0] sm:$0xff]
        %v659 = vld [vmem:[#allocation6 + $0x7e8] sm:$0xff]
        %v660 = vld [vmem:[#allocation6 + $0x7f0] sm:$0xff]
        %v661 = vld [vmem:[#allocation6 + $0x7f8] sm:$0xff]
        %v662 = vld [vmem:[#allocation8] sm:$0xff]
        %v664 = vperm.slane %v662, 0
        %v665 = vperm.slane %v662, 1
        %v666 = vperm.slane %v662, 2
        %v667 = vperm.slane %v662, 3
        %v668 = vperm.slane %v662, 4
        %v669 = vperm.slane %v662, 5
        %v670 = vperm.slane %v662, 6
        %v671 = vperm.slane %v662, 7
        %680 = vmatpush.msra.mxu0 %v526
        %681 = vmatpush.msra.mxu0 %v518
        %682 = vmatpush.msra.mxu0 %v510
        %683 = vmatpush.msra.mxu0 %v502
        %684 = vmatpush.msra.mxu0 %v494
        %685 = vmatpush.msra.mxu0 %v486
        %686 = vmatpush.msra.mxu0 %v478
        %687 = vmatpush.msra.mxu0 %v470
        %688 = vmatpush.msra.mxu0 %v462
        %689 = vmatpush.msra.mxu0 %v454
        %690 = vmatpush.msra.mxu0 %v446
        %691 = vmatpush.msra.mxu0 %v438
        %692 = vmatpush.msra.mxu0 %v430
        %693 = vmatpush.msra.mxu0 %v422
        %694 = vmatpush.msra.mxu0 %v414
        %695 = vmatpush.msra.mxu0 %v406
        %696 = vmatmul.f32.gmra.mxu0 %v404
        %v697 = vpop.f32.mrf.mxu0
        %v698 = vadd.f32 %v664, %v697
        %699 = vdwg.mxu0
        %700 = vmatpush.msra.mxu0 %v654
        %701 = vmatpush.msra.mxu0 %v646
        %702 = vmatpush.msra.mxu0 %v638
        %703 = vmatpush.msra.mxu0 %v630
        %704 = vmatpush.msra.mxu0 %v622
        %705 = vmatpush.msra.mxu0 %v614
        %706 = vmatpush.msra.mxu0 %v606
        %707 = vmatpush.msra.mxu0 %v598
        %708 = vmatpush.msra.mxu0 %v590
        %709 = vmatpush.msra.mxu0 %v582
        %710 = vmatpush.msra.mxu0 %v574
        %711 = vmatpush.msra.mxu0 %v566
        %712 = vmatpush.msra.mxu0 %v558
        %713 = vmatpush.msra.mxu0 %v550
        %714 = vmatpush.msra.mxu0 %v542
        %715 = vmatpush.msra.mxu0 %v534
        %716 = vmatmul.f32.gmra.mxu0 %v405
        %v717 = vpop.f32.mrf.mxu0
        %v718 = vadd.f32 %v698, %v717
        %719 = vdwg.mxu0
        %720 = vmatpush.msra.mxu0 %v527
        %721 = vmatpush.msra.mxu0 %v519
        %722 = vmatpush.msra.mxu0 %v511
        %723 = vmatpush.msra.mxu0 %v503
        %724 = vmatpush.msra.mxu0 %v495
        %725 = vmatpush.msra.mxu0 %v487
        %726 = vmatpush.msra.mxu0 %v479
        %727 = vmatpush.msra.mxu0 %v471
        %728 = vmatpush.msra.mxu0 %v463
        %729 = vmatpush.msra.mxu0 %v455
        %730 = vmatpush.msra.mxu0 %v447
        %731 = vmatpush.msra.mxu0 %v439
        %732 = vmatpush.msra.mxu0 %v431
        %733 = vmatpush.msra.mxu0 %v423
        %734 = vmatpush.msra.mxu0 %v415
        %735 = vmatpush.msra.mxu0 %v407
        %736 = vmatmul.f32.gmra.mxu0 %v404
        %v737 = vpop.f32.mrf.mxu0
        %v738 = vadd.f32 %v665, %v737
        %739 = vdwg.mxu0
        %740 = vmatpush.msra.mxu0 %v655
        %741 = vmatpush.msra.mxu0 %v647
        %742 = vmatpush.msra.mxu0 %v639
        %743 = vmatpush.msra.mxu0 %v631
        %744 = vmatpush.msra.mxu0 %v623
        %745 = vmatpush.msra.mxu0 %v615
        %746 = vmatpush.msra.mxu0 %v607
        %747 = vmatpush.msra.mxu0 %v599
        %748 = vmatpush.msra.mxu0 %v591
        %749 = vmatpush.msra.mxu0 %v583
        %750 = vmatpush.msra.mxu0 %v575
        %751 = vmatpush.msra.mxu0 %v567
        %752 = vmatpush.msra.mxu0 %v559
        %753 = vmatpush.msra.mxu0 %v551
        %754 = vmatpush.msra.mxu0 %v543
        %755 = vmatpush.msra.mxu0 %v535
        %756 = vmatmul.f32.gmra.mxu0 %v405
        %v757 = vpop.f32.mrf.mxu0
        %v758 = vadd.f32 %v738, %v757
        %759 = vdwg.mxu0
        %760 = vmatpush.msra.mxu0 %v528
        %761 = vmatpush.msra.mxu0 %v520
        %762 = vmatpush.msra.mxu0 %v512
        %763 = vmatpush.msra.mxu0 %v504
        %764 = vmatpush.msra.mxu0 %v496
        %765 = vmatpush.msra.mxu0 %v488
        %766 = vmatpush.msra.mxu0 %v480
        %767 = vmatpush.msra.mxu0 %v472
        %768 = vmatpush.msra.mxu0 %v464
        %769 = vmatpush.msra.mxu0 %v456
        %770 = vmatpush.msra.mxu0 %v448
        %771 = vmatpush.msra.mxu0 %v440
        %772 = vmatpush.msra.mxu0 %v432
        %773 = vmatpush.msra.mxu0 %v424
        %774 = vmatpush.msra.mxu0 %v416
        %775 = vmatpush.msra.mxu0 %v408
        %776 = vmatmul.f32.gmra.mxu0 %v404
        %v777 = vpop.f32.mrf.mxu0
        %v778 = vadd.f32 %v666, %v777
        %779 = vdwg.mxu0
        %780 = vmatpush.msra.mxu0 %v656
        %781 = vmatpush.msra.mxu0 %v648
        %782 = vmatpush.msra.mxu0 %v640
        %783 = vmatpush.msra.mxu0 %v632
        %784 = vmatpush.msra.mxu0 %v624
        %785 = vmatpush.msra.mxu0 %v616
        %786 = vmatpush.msra.mxu0 %v608
        %787 = vmatpush.msra.mxu0 %v600
        %788 = vmatpush.msra.mxu0 %v592
        %789 = vmatpush.msra.mxu0 %v584
        %790 = vmatpush.msra.mxu0 %v576
        %791 = vmatpush.msra.mxu0 %v568
        %792 = vmatpush.msra.mxu0 %v560
        %793 = vmatpush.msra.mxu0 %v552
        %794 = vmatpush.msra.mxu0 %v544
        %795 = vmatpush.msra.mxu0 %v536
        %796 = vmatmul.f32.gmra.mxu0 %v405
        %v797 = vpop.f32.mrf.mxu0
        %v798 = vadd.f32 %v778, %v797
        %799 = vdwg.mxu0
        %800 = vmatpush.msra.mxu0 %v529
        %801 = vmatpush.msra.mxu0 %v521
        %802 = vmatpush.msra.mxu0 %v513
        %803 = vmatpush.msra.mxu0 %v505
        %804 = vmatpush.msra.mxu0 %v497
        %805 = vmatpush.msra.mxu0 %v489
        %806 = vmatpush.msra.mxu0 %v481
        %807 = vmatpush.msra.mxu0 %v473
        %808 = vmatpush.msra.mxu0 %v465
        %809 = vmatpush.msra.mxu0 %v457
        %810 = vmatpush.msra.mxu0 %v449
        %811 = vmatpush.msra.mxu0 %v441
        %812 = vmatpush.msra.mxu0 %v433
        %813 = vmatpush.msra.mxu0 %v425
        %814 = vmatpush.msra.mxu0 %v417
        %815 = vmatpush.msra.mxu0 %v409
        %816 = vmatmul.f32.gmra.mxu0 %v404
        %v817 = vpop.f32.mrf.mxu0
        %v818 = vadd.f32 %v667, %v817
        %819 = vdwg.mxu0
        %820 = vmatpush.msra.mxu0 %v657
        %821 = vmatpush.msra.mxu0 %v649
        %822 = vmatpush.msra.mxu0 %v641
        %823 = vmatpush.msra.mxu0 %v633
        %824 = vmatpush.msra.mxu0 %v625
        %825 = vmatpush.msra.mxu0 %v617
        %826 = vmatpush.msra.mxu0 %v609
        %827 = vmatpush.msra.mxu0 %v601
        %828 = vmatpush.msra.mxu0 %v593
        %829 = vmatpush.msra.mxu0 %v585
        %830 = vmatpush.msra.mxu0 %v577
        %831 = vmatpush.msra.mxu0 %v569
        %832 = vmatpush.msra.mxu0 %v561
        %833 = vmatpush.msra.mxu0 %v553
        %834 = vmatpush.msra.mxu0 %v545
        %835 = vmatpush.msra.mxu0 %v537
        %836 = vmatmul.f32.gmra.mxu0 %v405
        %v837 = vpop.f32.mrf.mxu0
        %v838 = vadd.f32 %v818, %v837
        %839 = vdwg.mxu0
        %840 = vmatpush.msra.mxu0 %v530
        %841 = vmatpush.msra.mxu0 %v522
        %842 = vmatpush.msra.mxu0 %v514
        %843 = vmatpush.msra.mxu0 %v506
        %844 = vmatpush.msra.mxu0 %v498
        %845 = vmatpush.msra.mxu0 %v490
        %846 = vmatpush.msra.mxu0 %v482
        %847 = vmatpush.msra.mxu0 %v474
        %848 = vmatpush.msra.mxu0 %v466
        %849 = vmatpush.msra.mxu0 %v458
        %850 = vmatpush.msra.mxu0 %v450
        %851 = vmatpush.msra.mxu0 %v442
        %852 = vmatpush.msra.mxu0 %v434
        %853 = vmatpush.msra.mxu0 %v426
        %854 = vmatpush.msra.mxu0 %v418
        %855 = vmatpush.msra.mxu0 %v410
        %856 = vmatmul.f32.gmra.mxu0 %v404
        %v857 = vpop.f32.mrf.mxu0
        %v858 = vadd.f32 %v668, %v857
        %859 = vdwg.mxu0
        %860 = vmatpush.msra.mxu0 %v658
        %861 = vmatpush.msra.mxu0 %v650
        %862 = vmatpush.msra.mxu0 %v642
        %863 = vmatpush.msra.mxu0 %v634
        %864 = vmatpush.msra.mxu0 %v626
        %865 = vmatpush.msra.mxu0 %v618
        %866 = vmatpush.msra.mxu0 %v610
        %867 = vmatpush.msra.mxu0 %v602
        %868 = vmatpush.msra.mxu0 %v594
        %869 = vmatpush.msra.mxu0 %v586
        %870 = vmatpush.msra.mxu0 %v578
        %871 = vmatpush.msra.mxu0 %v570
        %872 = vmatpush.msra.mxu0 %v562
        %873 = vmatpush.msra.mxu0 %v554
        %874 = vmatpush.msra.mxu0 %v546
        %875 = vmatpush.msra.mxu0 %v538
        %876 = vmatmul.f32.gmra.mxu0 %v405
        %v877 = vpop.f32.mrf.mxu0
        %v878 = vadd.f32 %v858, %v877
        %879 = vdwg.mxu0
        %880 = vmatpush.msra.mxu0 %v531
        %881 = vmatpush.msra.mxu0 %v523
        %882 = vmatpush.msra.mxu0 %v515
        %883 = vmatpush.msra.mxu0 %v507
        %884 = vmatpush.msra.mxu0 %v499
        %885 = vmatpush.msra.mxu0 %v491
        %886 = vmatpush.msra.mxu0 %v483
        %887 = vmatpush.msra.mxu0 %v475
        %888 = vmatpush.msra.mxu0 %v467
        %889 = vmatpush.msra.mxu0 %v459
        %890 = vmatpush.msra.mxu0 %v451
        %891 = vmatpush.msra.mxu0 %v443
        %892 = vmatpush.msra.mxu0 %v435
        %893 = vmatpush.msra.mxu0 %v427
        %894 = vmatpush.msra.mxu0 %v419
        %895 = vmatpush.msra.mxu0 %v411
        %896 = vmatmul.f32.gmra.mxu0 %v404
        %v897 = vpop.f32.mrf.mxu0
        %v898 = vadd.f32 %v669, %v897
        %899 = vdwg.mxu0
        %900 = vmatpush.msra.mxu0 %v659
        %901 = vmatpush.msra.mxu0 %v651
        %902 = vmatpush.msra.mxu0 %v643
        %903 = vmatpush.msra.mxu0 %v635
        %904 = vmatpush.msra.mxu0 %v627
        %905 = vmatpush.msra.mxu0 %v619
        %906 = vmatpush.msra.mxu0 %v611
        %907 = vmatpush.msra.mxu0 %v603
        %908 = vmatpush.msra.mxu0 %v595
        %909 = vmatpush.msra.mxu0 %v587
        %910 = vmatpush.msra.mxu0 %v579
        %911 = vmatpush.msra.mxu0 %v571
        %912 = vmatpush.msra.mxu0 %v563
        %913 = vmatpush.msra.mxu0 %v555
        %914 = vmatpush.msra.mxu0 %v547
        %915 = vmatpush.msra.mxu0 %v539
        %916 = vmatmul.f32.gmra.mxu0 %v405
        %v917 = vpop.f32.mrf.mxu0
        %v918 = vadd.f32 %v898, %v917
        %919 = vdwg.mxu0
        %920 = vmatpush.msra.mxu0 %v532
        %921 = vmatpush.msra.mxu0 %v524
        %922 = vmatpush.msra.mxu0 %v516
        %923 = vmatpush.msra.mxu0 %v508
        %924 = vmatpush.msra.mxu0 %v500
        %925 = vmatpush.msra.mxu0 %v492
        %926 = vmatpush.msra.mxu0 %v484
        %927 = vmatpush.msra.mxu0 %v476
        %928 = vmatpush.msra.mxu0 %v468
        %929 = vmatpush.msra.mxu0 %v460
        %930 = vmatpush.msra.mxu0 %v452
        %931 = vmatpush.msra.mxu0 %v444
        %932 = vmatpush.msra.mxu0 %v436
        %933 = vmatpush.msra.mxu0 %v428
        %934 = vmatpush.msra.mxu0 %v420
        %935 = vmatpush.msra.mxu0 %v412
        %936 = vmatmul.f32.gmra.mxu0 %v404
        %v937 = vpop.f32.mrf.mxu0
        %v938 = vadd.f32 %v670, %v937
        %939 = vdwg.mxu0
        %940 = vmatpush.msra.mxu0 %v660
        %941 = vmatpush.msra.mxu0 %v652
        %942 = vmatpush.msra.mxu0 %v644
        %943 = vmatpush.msra.mxu0 %v636
        %944 = vmatpush.msra.mxu0 %v628
        %945 = vmatpush.msra.mxu0 %v620
        %946 = vmatpush.msra.mxu0 %v612
        %947 = vmatpush.msra.mxu0 %v604
        %948 = vmatpush.msra.mxu0 %v596
        %949 = vmatpush.msra.mxu0 %v588
        %950 = vmatpush.msra.mxu0 %v580
        %951 = vmatpush.msra.mxu0 %v572
        %952 = vmatpush.msra.mxu0 %v564
        %953 = vmatpush.msra.mxu0 %v556
        %954 = vmatpush.msra.mxu0 %v548
        %955 = vmatpush.msra.mxu0 %v540
        %956 = vmatmul.f32.gmra.mxu0 %v405
        %v957 = vpop.f32.mrf.mxu0
        %v958 = vadd.f32 %v938, %v957
        %959 = vdwg.mxu0
        %960 = vmatpush.msra.mxu0 %v533
        %961 = vmatpush.msra.mxu0 %v525
        %962 = vmatpush.msra.mxu0 %v517
        %963 = vmatpush.msra.mxu0 %v509
        %964 = vmatpush.msra.mxu0 %v501
        %965 = vmatpush.msra.mxu0 %v493
        %966 = vmatpush.msra.mxu0 %v485
        %967 = vmatpush.msra.mxu0 %v477
        %968 = vmatpush.msra.mxu0 %v469
        %969 = vmatpush.msra.mxu0 %v461
        %970 = vmatpush.msra.mxu0 %v453
        %971 = vmatpush.msra.mxu0 %v445
        %972 = vmatpush.msra.mxu0 %v437
        %973 = vmatpush.msra.mxu0 %v429
        %974 = vmatpush.msra.mxu0 %v421
        %975 = vmatpush.msra.mxu0 %v413
        %976 = vmatmul.f32.gmra.mxu0 %v404
        %v977 = vpop.f32.mrf.mxu0
        %v978 = vadd.f32 %v671, %v977
        %979 = vdwg.mxu0
        %980 = vmatpush.msra.mxu0 %v661
        %981 = vmatpush.msra.mxu0 %v653
        %982 = vmatpush.msra.mxu0 %v645
        %983 = vmatpush.msra.mxu0 %v637
        %984 = vmatpush.msra.mxu0 %v629
        %985 = vmatpush.msra.mxu0 %v621
        %986 = vmatpush.msra.mxu0 %v613
        %987 = vmatpush.msra.mxu0 %v605
        %988 = vmatpush.msra.mxu0 %v597
        %989 = vmatpush.msra.mxu0 %v589
        %990 = vmatpush.msra.mxu0 %v581
        %991 = vmatpush.msra.mxu0 %v573
        %992 = vmatpush.msra.mxu0 %v565
        %993 = vmatpush.msra.mxu0 %v557
        %994 = vmatpush.msra.mxu0 %v549
        %995 = vmatpush.msra.mxu0 %v541
        %996 = vmatmul.f32.gmra.mxu0 %v405
        %v997 = vpop.f32.mrf.mxu0
        %v998 = vadd.f32 %v978, %v997
        %999 = vdwg.mxu0
        %v1000 = vmax.f32 %v718, 0.0
        %v1001 = vmax.f32 %v758, 0.0
        %v1002 = vmax.f32 %v798, 0.0
        %v1003 = vmax.f32 %v838, 0.0
        %v1004 = vmax.f32 %v878, 0.0
        %v1005 = vmax.f32 %v918, 0.0
        %v1006 = vmax.f32 %v958, 0.0
        %v1007 = vmax.f32 %v998, 0.0
        %v1008 = vld [vmem:[#allocation2] sm:$0xff]
        %v1009 = vld [vmem:[#allocation2 + $0x8] sm:$0xff]
        %v1010 = vld [vmem:[#allocation9] sm:$0xff]
        %v1011 = vld [vmem:[#allocation9 + $0x8] sm:$0xff]
        %v1012 = vld [vmem:[#allocation9 + $0x10] sm:$0xff]
        %v1013 = vld [vmem:[#allocation9 + $0x18] sm:$0xff]
        %v1014 = vld [vmem:[#allocation9 + $0x20] sm:$0xff]
        %v1015 = vld [vmem:[#allocation9 + $0x28] sm:$0xff]
        %v1016 = vld [vmem:[#allocation9 + $0x30] sm:$0xff]
        %v1017 = vld [vmem:[#allocation9 + $0x38] sm:$0xff]
        %v1018 = vld [vmem:[#allocation9 + $0x40] sm:$0xff]
        %v1019 = vld [vmem:[#allocation9 + $0x48] sm:$0xff]
        %v1020 = vld [vmem:[#allocation9 + $0x50] sm:$0xff]
        %v1021 = vld [vmem:[#allocation9 + $0x58] sm:$0xff]
        %v1022 = vld [vmem:[#allocation9 + $0x60] sm:$0xff]
        %v1023 = vld [vmem:[#allocation9 + $0x68] sm:$0xff]
        %v1024 = vld [vmem:[#allocation9 + $0x70] sm:$0xff]
        %v1025 = vld [vmem:[#allocation9 + $0x78] sm:$0xff]
        %v1026 = vld [vmem:[#allocation9 + $0x80] sm:$0xff]
        %v1027 = vld [vmem:[#allocation9 + $0x88] sm:$0xff]
        %v1028 = vld [vmem:[#allocation9 + $0x90] sm:$0xff]
        %v1029 = vld [vmem:[#allocation9 + $0x98] sm:$0xff]
        %v1030 = vld [vmem:[#allocation9 + $0xa0] sm:$0xff]
        %v1031 = vld [vmem:[#allocation9 + $0xa8] sm:$0xff]
        %v1032 = vld [vmem:[#allocation9 + $0xb0] sm:$0xff]
        %v1033 = vld [vmem:[#allocation9 + $0xb8] sm:$0xff]
        %v1034 = vld [vmem:[#allocation9 + $0xc0] sm:$0xff]
        %v1035 = vld [vmem:[#allocation9 + $0xc8] sm:$0xff]
        %v1036 = vld [vmem:[#allocation9 + $0xd0] sm:$0xff]
        %v1037 = vld [vmem:[#allocation9 + $0xd8] sm:$0xff]
        %v1038 = vld [vmem:[#allocation9 + $0xe0] sm:$0xff]
        %v1039 = vld [vmem:[#allocation9 + $0xe8] sm:$0xff]
        %v1040 = vld [vmem:[#allocation9 + $0xf0] sm:$0xff]
        %v1041 = vld [vmem:[#allocation9 + $0xf8] sm:$0xff]
        %v1042 = vld [vmem:[#allocation9 + $0x100] sm:$0xff]
        %v1043 = vld [vmem:[#allocation9 + $0x108] sm:$0xff]
        %v1044 = vld [vmem:[#allocation9 + $0x110] sm:$0xff]
        %v1045 = vld [vmem:[#allocation9 + $0x118] sm:$0xff]
        %v1046 = vld [vmem:[#allocation9 + $0x120] sm:$0xff]
        %v1047 = vld [vmem:[#allocation9 + $0x128] sm:$0xff]
        %v1048 = vld [vmem:[#allocation9 + $0x130] sm:$0xff]
        %v1049 = vld [vmem:[#allocation9 + $0x138] sm:$0xff]
        %v1050 = vld [vmem:[#allocation9 + $0x140] sm:$0xff]
        %v1051 = vld [vmem:[#allocation9 + $0x148] sm:$0xff]
        %v1052 = vld [vmem:[#allocation9 + $0x150] sm:$0xff]
        %v1053 = vld [vmem:[#allocation9 + $0x158] sm:$0xff]
        %v1054 = vld [vmem:[#allocation9 + $0x160] sm:$0xff]
        %v1055 = vld [vmem:[#allocation9 + $0x168] sm:$0xff]
        %v1056 = vld [vmem:[#allocation9 + $0x170] sm:$0xff]
        %v1057 = vld [vmem:[#allocation9 + $0x178] sm:$0xff]
        %v1058 = vld [vmem:[#allocation9 + $0x180] sm:$0xff]
        %v1059 = vld [vmem:[#allocation9 + $0x188] sm:$0xff]
        %v1060 = vld [vmem:[#allocation9 + $0x190] sm:$0xff]
        %v1061 = vld [vmem:[#allocation9 + $0x198] sm:$0xff]
        %v1062 = vld [vmem:[#allocation9 + $0x1a0] sm:$0xff]
        %v1063 = vld [vmem:[#allocation9 + $0x1a8] sm:$0xff]
        %v1064 = vld [vmem:[#allocation9 + $0x1b0] sm:$0xff]
        %v1065 = vld [vmem:[#allocation9 + $0x1b8] sm:$0xff]
        %v1066 = vld [vmem:[#allocation9 + $0x1c0] sm:$0xff]
        %v1067 = vld [vmem:[#allocation9 + $0x1c8] sm:$0xff]
        %v1068 = vld [vmem:[#allocation9 + $0x1d0] sm:$0xff]
        %v1069 = vld [vmem:[#allocation9 + $0x1d8] sm:$0xff]
        %v1070 = vld [vmem:[#allocation9 + $0x1e0] sm:$0xff]
        %v1071 = vld [vmem:[#allocation9 + $0x1e8] sm:$0xff]
        %v1072 = vld [vmem:[#allocation9 + $0x1f0] sm:$0xff]
        %v1073 = vld [vmem:[#allocation9 + $0x1f8] sm:$0xff]
        %v1074 = vld [vmem:[#allocation9 + $0x200] sm:$0xff]
        %v1075 = vld [vmem:[#allocation9 + $0x208] sm:$0xff]
        %v1076 = vld [vmem:[#allocation9 + $0x210] sm:$0xff]
        %v1077 = vld [vmem:[#allocation9 + $0x218] sm:$0xff]
        %v1078 = vld [vmem:[#allocation9 + $0x220] sm:$0xff]
        %v1079 = vld [vmem:[#allocation9 + $0x228] sm:$0xff]
        %v1080 = vld [vmem:[#allocation9 + $0x230] sm:$0xff]
        %v1081 = vld [vmem:[#allocation9 + $0x238] sm:$0xff]
        %v1082 = vld [vmem:[#allocation9 + $0x240] sm:$0xff]
        %v1083 = vld [vmem:[#allocation9 + $0x248] sm:$0xff]
        %v1084 = vld [vmem:[#allocation9 + $0x250] sm:$0xff]
        %v1085 = vld [vmem:[#allocation9 + $0x258] sm:$0xff]
        %v1086 = vld [vmem:[#allocation9 + $0x260] sm:$0xff]
        %v1087 = vld [vmem:[#allocation9 + $0x268] sm:$0xff]
        %v1088 = vld [vmem:[#allocation9 + $0x270] sm:$0xff]
        %v1089 = vld [vmem:[#allocation9 + $0x278] sm:$0xff]
        %v1090 = vld [vmem:[#allocation9 + $0x280] sm:$0xff]
        %v1091 = vld [vmem:[#allocation9 + $0x288] sm:$0xff]
        %v1092 = vld [vmem:[#allocation9 + $0x290] sm:$0xff]
        %v1093 = vld [vmem:[#allocation9 + $0x298] sm:$0xff]
        %v1094 = vld [vmem:[#allocation9 + $0x2a0] sm:$0xff]
        %v1095 = vld [vmem:[#allocation9 + $0x2a8] sm:$0xff]
        %v1096 = vld [vmem:[#allocation9 + $0x2b0] sm:$0xff]
        %v1097 = vld [vmem:[#allocation9 + $0x2b8] sm:$0xff]
        %v1098 = vld [vmem:[#allocation9 + $0x2c0] sm:$0xff]
        %v1099 = vld [vmem:[#allocation9 + $0x2c8] sm:$0xff]
        %v1100 = vld [vmem:[#allocation9 + $0x2d0] sm:$0xff]
        %v1101 = vld [vmem:[#allocation9 + $0x2d8] sm:$0xff]
        %v1102 = vld [vmem:[#allocation9 + $0x2e0] sm:$0xff]
        %v1103 = vld [vmem:[#allocation9 + $0x2e8] sm:$0xff]
        %v1104 = vld [vmem:[#allocation9 + $0x2f0] sm:$0xff]
        %v1105 = vld [vmem:[#allocation9 + $0x2f8] sm:$0xff]
        %v1106 = vld [vmem:[#allocation9 + $0x300] sm:$0xff]
        %v1107 = vld [vmem:[#allocation9 + $0x308] sm:$0xff]
        %v1108 = vld [vmem:[#allocation9 + $0x310] sm:$0xff]
        %v1109 = vld [vmem:[#allocation9 + $0x318] sm:$0xff]
        %v1110 = vld [vmem:[#allocation9 + $0x320] sm:$0xff]
        %v1111 = vld [vmem:[#allocation9 + $0x328] sm:$0xff]
        %v1112 = vld [vmem:[#allocation9 + $0x330] sm:$0xff]
        %v1113 = vld [vmem:[#allocation9 + $0x338] sm:$0xff]
        %v1114 = vld [vmem:[#allocation9 + $0x340] sm:$0xff]
        %v1115 = vld [vmem:[#allocation9 + $0x348] sm:$0xff]
        %v1116 = vld [vmem:[#allocation9 + $0x350] sm:$0xff]
        %v1117 = vld [vmem:[#allocation9 + $0x358] sm:$0xff]
        %v1118 = vld [vmem:[#allocation9 + $0x360] sm:$0xff]
        %v1119 = vld [vmem:[#allocation9 + $0x368] sm:$0xff]
        %v1120 = vld [vmem:[#allocation9 + $0x370] sm:$0xff]
        %v1121 = vld [vmem:[#allocation9 + $0x378] sm:$0xff]
        %v1122 = vld [vmem:[#allocation9 + $0x380] sm:$0xff]
        %v1123 = vld [vmem:[#allocation9 + $0x388] sm:$0xff]
        %v1124 = vld [vmem:[#allocation9 + $0x390] sm:$0xff]
        %v1125 = vld [vmem:[#allocation9 + $0x398] sm:$0xff]
        %v1126 = vld [vmem:[#allocation9 + $0x3a0] sm:$0xff]
        %v1127 = vld [vmem:[#allocation9 + $0x3a8] sm:$0xff]
        %v1128 = vld [vmem:[#allocation9 + $0x3b0] sm:$0xff]
        %v1129 = vld [vmem:[#allocation9 + $0x3b8] sm:$0xff]
        %v1130 = vld [vmem:[#allocation9 + $0x3c0] sm:$0xff]
        %v1131 = vld [vmem:[#allocation9 + $0x3c8] sm:$0xff]
        %v1132 = vld [vmem:[#allocation9 + $0x3d0] sm:$0xff]
        %v1133 = vld [vmem:[#allocation9 + $0x3d8] sm:$0xff]
        %v1134 = vld [vmem:[#allocation9 + $0x3e0] sm:$0xff]
        %v1135 = vld [vmem:[#allocation9 + $0x3e8] sm:$0xff]
        %v1136 = vld [vmem:[#allocation9 + $0x3f0] sm:$0xff]
        %v1137 = vld [vmem:[#allocation9 + $0x3f8] sm:$0xff]
        %v1138 = vld [vmem:[#allocation9 + $0x400] sm:$0xff]
        %v1139 = vld [vmem:[#allocation9 + $0x408] sm:$0xff]
        %v1140 = vld [vmem:[#allocation9 + $0x410] sm:$0xff]
        %v1141 = vld [vmem:[#allocation9 + $0x418] sm:$0xff]
        %v1142 = vld [vmem:[#allocation9 + $0x420] sm:$0xff]
        %v1143 = vld [vmem:[#allocation9 + $0x428] sm:$0xff]
        %v1144 = vld [vmem:[#allocation9 + $0x430] sm:$0xff]
        %v1145 = vld [vmem:[#allocation9 + $0x438] sm:$0xff]
        %v1146 = vld [vmem:[#allocation9 + $0x440] sm:$0xff]
        %v1147 = vld [vmem:[#allocation9 + $0x448] sm:$0xff]
        %v1148 = vld [vmem:[#allocation9 + $0x450] sm:$0xff]
        %v1149 = vld [vmem:[#allocation9 + $0x458] sm:$0xff]
        %v1150 = vld [vmem:[#allocation9 + $0x460] sm:$0xff]
        %v1151 = vld [vmem:[#allocation9 + $0x468] sm:$0xff]
        %v1152 = vld [vmem:[#allocation9 + $0x470] sm:$0xff]
        %v1153 = vld [vmem:[#allocation9 + $0x478] sm:$0xff]
        %v1154 = vld [vmem:[#allocation9 + $0x480] sm:$0xff]
        %v1155 = vld [vmem:[#allocation9 + $0x488] sm:$0xff]
        %v1156 = vld [vmem:[#allocation9 + $0x490] sm:$0xff]
        %v1157 = vld [vmem:[#allocation9 + $0x498] sm:$0xff]
        %v1158 = vld [vmem:[#allocation9 + $0x4a0] sm:$0xff]
        %v1159 = vld [vmem:[#allocation9 + $0x4a8] sm:$0xff]
        %v1160 = vld [vmem:[#allocation9 + $0x4b0] sm:$0xff]
        %v1161 = vld [vmem:[#allocation9 + $0x4b8] sm:$0xff]
        %v1162 = vld [vmem:[#allocation9 + $0x4c0] sm:$0xff]
        %v1163 = vld [vmem:[#allocation9 + $0x4c8] sm:$0xff]
        %v1164 = vld [vmem:[#allocation9 + $0x4d0] sm:$0xff]
        %v1165 = vld [vmem:[#allocation9 + $0x4d8] sm:$0xff]
        %v1166 = vld [vmem:[#allocation9 + $0x4e0] sm:$0xff]
        %v1167 = vld [vmem:[#allocation9 + $0x4e8] sm:$0xff]
        %v1168 = vld [vmem:[#allocation9 + $0x4f0] sm:$0xff]
        %v1169 = vld [vmem:[#allocation9 + $0x4f8] sm:$0xff]
        %v1170 = vld [vmem:[#allocation9 + $0x500] sm:$0xff]
        %v1171 = vld [vmem:[#allocation9 + $0x508] sm:$0xff]
        %v1172 = vld [vmem:[#allocation9 + $0x510] sm:$0xff]
        %v1173 = vld [vmem:[#allocation9 + $0x518] sm:$0xff]
        %v1174 = vld [vmem:[#allocation9 + $0x520] sm:$0xff]
        %v1175 = vld [vmem:[#allocation9 + $0x528] sm:$0xff]
        %v1176 = vld [vmem:[#allocation9 + $0x530] sm:$0xff]
        %v1177 = vld [vmem:[#allocation9 + $0x538] sm:$0xff]
        %v1178 = vld [vmem:[#allocation9 + $0x540] sm:$0xff]
        %v1179 = vld [vmem:[#allocation9 + $0x548] sm:$0xff]
        %v1180 = vld [vmem:[#allocation9 + $0x550] sm:$0xff]
        %v1181 = vld [vmem:[#allocation9 + $0x558] sm:$0xff]
        %v1182 = vld [vmem:[#allocation9 + $0x560] sm:$0xff]
        %v1183 = vld [vmem:[#allocation9 + $0x568] sm:$0xff]
        %v1184 = vld [vmem:[#allocation9 + $0x570] sm:$0xff]
        %v1185 = vld [vmem:[#allocation9 + $0x578] sm:$0xff]
        %v1186 = vld [vmem:[#allocation9 + $0x580] sm:$0xff]
        %v1187 = vld [vmem:[#allocation9 + $0x588] sm:$0xff]
        %v1188 = vld [vmem:[#allocation9 + $0x590] sm:$0xff]
        %v1189 = vld [vmem:[#allocation9 + $0x598] sm:$0xff]
        %v1190 = vld [vmem:[#allocation9 + $0x5a0] sm:$0xff]
        %v1191 = vld [vmem:[#allocation9 + $0x5a8] sm:$0xff]
        %v1192 = vld [vmem:[#allocation9 + $0x5b0] sm:$0xff]
        %v1193 = vld [vmem:[#allocation9 + $0x5b8] sm:$0xff]
        %v1194 = vld [vmem:[#allocation9 + $0x5c0] sm:$0xff]
        %v1195 = vld [vmem:[#allocation9 + $0x5c8] sm:$0xff]
        %v1196 = vld [vmem:[#allocation9 + $0x5d0] sm:$0xff]
        %v1197 = vld [vmem:[#allocation9 + $0x5d8] sm:$0xff]
        %v1198 = vld [vmem:[#allocation9 + $0x5e0] sm:$0xff]
        %v1199 = vld [vmem:[#allocation9 + $0x5e8] sm:$0xff]
        %v1200 = vld [vmem:[#allocation9 + $0x5f0] sm:$0xff]
        %v1201 = vld [vmem:[#allocation9 + $0x5f8] sm:$0xff]
        %v1202 = vld [vmem:[#allocation9 + $0x600] sm:$0xff]
        %v1203 = vld [vmem:[#allocation9 + $0x608] sm:$0xff]
        %v1204 = vld [vmem:[#allocation9 + $0x610] sm:$0xff]
        %v1205 = vld [vmem:[#allocation9 + $0x618] sm:$0xff]
        %v1206 = vld [vmem:[#allocation9 + $0x620] sm:$0xff]
        %v1207 = vld [vmem:[#allocation9 + $0x628] sm:$0xff]
        %v1208 = vld [vmem:[#allocation9 + $0x630] sm:$0xff]
        %v1209 = vld [vmem:[#allocation9 + $0x638] sm:$0xff]
        %v1210 = vld [vmem:[#allocation9 + $0x640] sm:$0xff]
        %v1211 = vld [vmem:[#allocation9 + $0x648] sm:$0xff]
        %v1212 = vld [vmem:[#allocation9 + $0x650] sm:$0xff]
        %v1213 = vld [vmem:[#allocation9 + $0x658] sm:$0xff]
        %v1214 = vld [vmem:[#allocation9 + $0x660] sm:$0xff]
        %v1215 = vld [vmem:[#allocation9 + $0x668] sm:$0xff]
        %v1216 = vld [vmem:[#allocation9 + $0x670] sm:$0xff]
        %v1217 = vld [vmem:[#allocation9 + $0x678] sm:$0xff]
        %v1218 = vld [vmem:[#allocation9 + $0x680] sm:$0xff]
        %v1219 = vld [vmem:[#allocation9 + $0x688] sm:$0xff]
        %v1220 = vld [vmem:[#allocation9 + $0x690] sm:$0xff]
        %v1221 = vld [vmem:[#allocation9 + $0x698] sm:$0xff]
        %v1222 = vld [vmem:[#allocation9 + $0x6a0] sm:$0xff]
        %v1223 = vld [vmem:[#allocation9 + $0x6a8] sm:$0xff]
        %v1224 = vld [vmem:[#allocation9 + $0x6b0] sm:$0xff]
        %v1225 = vld [vmem:[#allocation9 + $0x6b8] sm:$0xff]
        %v1226 = vld [vmem:[#allocation9 + $0x6c0] sm:$0xff]
        %v1227 = vld [vmem:[#allocation9 + $0x6c8] sm:$0xff]
        %v1228 = vld [vmem:[#allocation9 + $0x6d0] sm:$0xff]
        %v1229 = vld [vmem:[#allocation9 + $0x6d8] sm:$0xff]
        %v1230 = vld [vmem:[#allocation9 + $0x6e0] sm:$0xff]
        %v1231 = vld [vmem:[#allocation9 + $0x6e8] sm:$0xff]
        %v1232 = vld [vmem:[#allocation9 + $0x6f0] sm:$0xff]
        %v1233 = vld [vmem:[#allocation9 + $0x6f8] sm:$0xff]
        %v1234 = vld [vmem:[#allocation9 + $0x700] sm:$0xff]
        %v1235 = vld [vmem:[#allocation9 + $0x708] sm:$0xff]
        %v1236 = vld [vmem:[#allocation9 + $0x710] sm:$0xff]
        %v1237 = vld [vmem:[#allocation9 + $0x718] sm:$0xff]
        %v1238 = vld [vmem:[#allocation9 + $0x720] sm:$0xff]
        %v1239 = vld [vmem:[#allocation9 + $0x728] sm:$0xff]
        %v1240 = vld [vmem:[#allocation9 + $0x730] sm:$0xff]
        %v1241 = vld [vmem:[#allocation9 + $0x738] sm:$0xff]
        %v1242 = vld [vmem:[#allocation9 + $0x740] sm:$0xff]
        %v1243 = vld [vmem:[#allocation9 + $0x748] sm:$0xff]
        %v1244 = vld [vmem:[#allocation9 + $0x750] sm:$0xff]
        %v1245 = vld [vmem:[#allocation9 + $0x758] sm:$0xff]
        %v1246 = vld [vmem:[#allocation9 + $0x760] sm:$0xff]
        %v1247 = vld [vmem:[#allocation9 + $0x768] sm:$0xff]
        %v1248 = vld [vmem:[#allocation9 + $0x770] sm:$0xff]
        %v1249 = vld [vmem:[#allocation9 + $0x778] sm:$0xff]
        %v1250 = vld [vmem:[#allocation9 + $0x780] sm:$0xff]
        %v1251 = vld [vmem:[#allocation9 + $0x788] sm:$0xff]
        %v1252 = vld [vmem:[#allocation9 + $0x790] sm:$0xff]
        %v1253 = vld [vmem:[#allocation9 + $0x798] sm:$0xff]
        %v1254 = vld [vmem:[#allocation9 + $0x7a0] sm:$0xff]
        %v1255 = vld [vmem:[#allocation9 + $0x7a8] sm:$0xff]
        %v1256 = vld [vmem:[#allocation9 + $0x7b0] sm:$0xff]
        %v1257 = vld [vmem:[#allocation9 + $0x7b8] sm:$0xff]
        %v1258 = vld [vmem:[#allocation9 + $0x7c0] sm:$0xff]
        %v1259 = vld [vmem:[#allocation9 + $0x7c8] sm:$0xff]
        %v1260 = vld [vmem:[#allocation9 + $0x7d0] sm:$0xff]
        %v1261 = vld [vmem:[#allocation9 + $0x7d8] sm:$0xff]
        %v1262 = vld [vmem:[#allocation9 + $0x7e0] sm:$0xff]
        %v1263 = vld [vmem:[#allocation9 + $0x7e8] sm:$0xff]
        %v1264 = vld [vmem:[#allocation9 + $0x7f0] sm:$0xff]
        %v1265 = vld [vmem:[#allocation9 + $0x7f8] sm:$0xff]
        %1266 = vmatpush.msra.mxu0 %v1040
        %1267 = vmatpush.msra.mxu0 %v1038
        %1268 = vmatpush.msra.mxu0 %v1036
        %1269 = vmatpush.msra.mxu0 %v1034
        %1270 = vmatpush.msra.mxu0 %v1032
        %1271 = vmatpush.msra.mxu0 %v1030
        %1272 = vmatpush.msra.mxu0 %v1028
        %1273 = vmatpush.msra.mxu0 %v1026
        %1274 = vmatpush.msra.mxu0 %v1024
        %1275 = vmatpush.msra.mxu0 %v1022
        %1276 = vmatpush.msra.mxu0 %v1020
        %1277 = vmatpush.msra.mxu0 %v1018
        %1278 = vmatpush.msra.mxu0 %v1016
        %1279 = vmatpush.msra.mxu0 %v1014
        %1280 = vmatpush.msra.mxu0 %v1012
        %1281 = vmatpush.msra.mxu0 %v1010
        %1282 = vmatmul.f32.gmra.mxu0 %v1000
        %v1283 = vpop.f32.mrf.mxu0
        %v1284 = vadd.f32 0.0, %v1283
        %1285 = vdwg.mxu0
        %1286 = vmatpush.msra.mxu0 %v1072
        %1287 = vmatpush.msra.mxu0 %v1070
        %1288 = vmatpush.msra.mxu0 %v1068
        %1289 = vmatpush.msra.mxu0 %v1066
        %1290 = vmatpush.msra.mxu0 %v1064
        %1291 = vmatpush.msra.mxu0 %v1062
        %1292 = vmatpush.msra.mxu0 %v1060
        %1293 = vmatpush.msra.mxu0 %v1058
        %1294 = vmatpush.msra.mxu0 %v1056
        %1295 = vmatpush.msra.mxu0 %v1054
        %1296 = vmatpush.msra.mxu0 %v1052
        %1297 = vmatpush.msra.mxu0 %v1050
        %1298 = vmatpush.msra.mxu0 %v1048
        %1299 = vmatpush.msra.mxu0 %v1046
        %1300 = vmatpush.msra.mxu0 %v1044
        %1301 = vmatpush.msra.mxu0 %v1042
        %1302 = vmatmul.f32.gmra.mxu0 %v1001
        %v1303 = vpop.f32.mrf.mxu0
        %v1304 = vadd.f32 %v1284, %v1303
        %1305 = vdwg.mxu0
        %1306 = vmatpush.msra.mxu0 %v1104
        %1307 = vmatpush.msra.mxu0 %v1102
        %1308 = vmatpush.msra.mxu0 %v1100
        %1309 = vmatpush.msra.mxu0 %v1098
        %1310 = vmatpush.msra.mxu0 %v1096
        %1311 = vmatpush.msra.mxu0 %v1094
        %1312 = vmatpush.msra.mxu0 %v1092
        %1313 = vmatpush.msra.mxu0 %v1090
        %1314 = vmatpush.msra.mxu0 %v1088
        %1315 = vmatpush.msra.mxu0 %v1086
        %1316 = vmatpush.msra.mxu0 %v1084
        %1317 = vmatpush.msra.mxu0 %v1082
        %1318 = vmatpush.msra.mxu0 %v1080
        %1319 = vmatpush.msra.mxu0 %v1078
        %1320 = vmatpush.msra.mxu0 %v1076
        %1321 = vmatpush.msra.mxu0 %v1074
        %1322 = vmatmul.f32.gmra.mxu0 %v1002
        %v1323 = vpop.f32.mrf.mxu0
        %v1324 = vadd.f32 %v1304, %v1323
        %1325 = vdwg.mxu0
        %1326 = vmatpush.msra.mxu0 %v1136
        %1327 = vmatpush.msra.mxu0 %v1134
        %1328 = vmatpush.msra.mxu0 %v1132
        %1329 = vmatpush.msra.mxu0 %v1130
        %1330 = vmatpush.msra.mxu0 %v1128
        %1331 = vmatpush.msra.mxu0 %v1126
        %1332 = vmatpush.msra.mxu0 %v1124
        %1333 = vmatpush.msra.mxu0 %v1122
        %1334 = vmatpush.msra.mxu0 %v1120
        %1335 = vmatpush.msra.mxu0 %v1118
        %1336 = vmatpush.msra.mxu0 %v1116
        %1337 = vmatpush.msra.mxu0 %v1114
        %1338 = vmatpush.msra.mxu0 %v1112
        %1339 = vmatpush.msra.mxu0 %v1110
        %1340 = vmatpush.msra.mxu0 %v1108
        %1341 = vmatpush.msra.mxu0 %v1106
        %1342 = vmatmul.f32.gmra.mxu0 %v1003
        %v1343 = vpop.f32.mrf.mxu0
        %v1344 = vadd.f32 %v1324, %v1343
        %1345 = vdwg.mxu0
        %1346 = vmatpush.msra.mxu0 %v1168
        %1347 = vmatpush.msra.mxu0 %v1166
        %1348 = vmatpush.msra.mxu0 %v1164
        %1349 = vmatpush.msra.mxu0 %v1162
        %1350 = vmatpush.msra.mxu0 %v1160
        %1351 = vmatpush.msra.mxu0 %v1158
        %1352 = vmatpush.msra.mxu0 %v1156
        %1353 = vmatpush.msra.mxu0 %v1154
        %1354 = vmatpush.msra.mxu0 %v1152
        %1355 = vmatpush.msra.mxu0 %v1150
        %1356 = vmatpush.msra.mxu0 %v1148
        %1357 = vmatpush.msra.mxu0 %v1146
        %1358 = vmatpush.msra.mxu0 %v1144
        %1359 = vmatpush.msra.mxu0 %v1142
        %1360 = vmatpush.msra.mxu0 %v1140
        %1361 = vmatpush.msra.mxu0 %v1138
        %1362 = vmatmul.f32.gmra.mxu0 %v1004
        %v1363 = vpop.f32.mrf.mxu0
        %v1364 = vadd.f32 %v1344, %v1363
        %1365 = vdwg.mxu0
        %1366 = vmatpush.msra.mxu0 %v1200
        %1367 = vmatpush.msra.mxu0 %v1198
        %1368 = vmatpush.msra.mxu0 %v1196
        %1369 = vmatpush.msra.mxu0 %v1194
        %1370 = vmatpush.msra.mxu0 %v1192
        %1371 = vmatpush.msra.mxu0 %v1190
        %1372 = vmatpush.msra.mxu0 %v1188
        %1373 = vmatpush.msra.mxu0 %v1186
        %1374 = vmatpush.msra.mxu0 %v1184
        %1375 = vmatpush.msra.mxu0 %v1182
        %1376 = vmatpush.msra.mxu0 %v1180
        %1377 = vmatpush.msra.mxu0 %v1178
        %1378 = vmatpush.msra.mxu0 %v1176
        %1379 = vmatpush.msra.mxu0 %v1174
        %1380 = vmatpush.msra.mxu0 %v1172
        %1381 = vmatpush.msra.mxu0 %v1170
        %1382 = vmatmul.f32.gmra.mxu0 %v1005
        %v1383 = vpop.f32.mrf.mxu0
        %v1384 = vadd.f32 %v1364, %v1383
        %1385 = vdwg.mxu0
        %1386 = vmatpush.msra.mxu0 %v1232
        %1387 = vmatpush.msra.mxu0 %v1230
        %1388 = vmatpush.msra.mxu0 %v1228
        %1389 = vmatpush.msra.mxu0 %v1226
        %1390 = vmatpush.msra.mxu0 %v1224
        %1391 = vmatpush.msra.mxu0 %v1222
        %1392 = vmatpush.msra.mxu0 %v1220
        %1393 = vmatpush.msra.mxu0 %v1218
        %1394 = vmatpush.msra.mxu0 %v1216
        %1395 = vmatpush.msra.mxu0 %v1214
        %1396 = vmatpush.msra.mxu0 %v1212
        %1397 = vmatpush.msra.mxu0 %v1210
        %1398 = vmatpush.msra.mxu0 %v1208
        %1399 = vmatpush.msra.mxu0 %v1206
        %1400 = vmatpush.msra.mxu0 %v1204
        %1401 = vmatpush.msra.mxu0 %v1202
        %1402 = vmatmul.f32.gmra.mxu0 %v1006
        %v1403 = vpop.f32.mrf.mxu0
        %v1404 = vadd.f32 %v1384, %v1403
        %1405 = vdwg.mxu0
        %1406 = vmatpush.msra.mxu0 %v1264
        %1407 = vmatpush.msra.mxu0 %v1262
        %1408 = vmatpush.msra.mxu0 %v1260
        %1409 = vmatpush.msra.mxu0 %v1258
        %1410 = vmatpush.msra.mxu0 %v1256
        %1411 = vmatpush.msra.mxu0 %v1254
        %1412 = vmatpush.msra.mxu0 %v1252
        %1413 = vmatpush.msra.mxu0 %v1250
        %1414 = vmatpush.msra.mxu0 %v1248
        %1415 = vmatpush.msra.mxu0 %v1246
        %1416 = vmatpush.msra.mxu0 %v1244
        %1417 = vmatpush.msra.mxu0 %v1242
        %1418 = vmatpush.msra.mxu0 %v1240
        %1419 = vmatpush.msra.mxu0 %v1238
        %1420 = vmatpush.msra.mxu0 %v1236
        %1421 = vmatpush.msra.mxu0 %v1234
        %1422 = vmatmul.f32.gmra.mxu0 %v1007
        %v1423 = vpop.f32.mrf.mxu0
        %v1424 = vadd.f32 %v1404, %v1423
        %1425 = vdwg.mxu0
        %1426 = vmatpush.msra.mxu0 %v1041
        %1427 = vmatpush.msra.mxu0 %v1039
        %1428 = vmatpush.msra.mxu0 %v1037
        %1429 = vmatpush.msra.mxu0 %v1035
        %1430 = vmatpush.msra.mxu0 %v1033
        %1431 = vmatpush.msra.mxu0 %v1031
        %1432 = vmatpush.msra.mxu0 %v1029
        %1433 = vmatpush.msra.mxu0 %v1027
        %1434 = vmatpush.msra.mxu0 %v1025
        %1435 = vmatpush.msra.mxu0 %v1023
        %1436 = vmatpush.msra.mxu0 %v1021
        %1437 = vmatpush.msra.mxu0 %v1019
        %1438 = vmatpush.msra.mxu0 %v1017
        %1439 = vmatpush.msra.mxu0 %v1015
        %1440 = vmatpush.msra.mxu0 %v1013
        %1441 = vmatpush.msra.mxu0 %v1011
        %1442 = vmatmul.f32.gmra.mxu0 %v1000
        %v1443 = vpop.f32.mrf.mxu0
        %v1444 = vadd.f32 0.0, %v1443
        %1445 = vdwg.mxu0
        %1446 = vmatpush.msra.mxu0 %v1073
        %1447 = vmatpush.msra.mxu0 %v1071
        %1448 = vmatpush.msra.mxu0 %v1069
        %1449 = vmatpush.msra.mxu0 %v1067
        %1450 = vmatpush.msra.mxu0 %v1065
        %1451 = vmatpush.msra.mxu0 %v1063
        %1452 = vmatpush.msra.mxu0 %v1061
        %1453 = vmatpush.msra.mxu0 %v1059
        %1454 = vmatpush.msra.mxu0 %v1057
        %1455 = vmatpush.msra.mxu0 %v1055
        %1456 = vmatpush.msra.mxu0 %v1053
        %1457 = vmatpush.msra.mxu0 %v1051
        %1458 = vmatpush.msra.mxu0 %v1049
        %1459 = vmatpush.msra.mxu0 %v1047
        %1460 = vmatpush.msra.mxu0 %v1045
        %1461 = vmatpush.msra.mxu0 %v1043
        %1462 = vmatmul.f32.gmra.mxu0 %v1001
        %v1463 = vpop.f32.mrf.mxu0
        %v1464 = vadd.f32 %v1444, %v1463
        %1465 = vdwg.mxu0
        %1466 = vmatpush.msra.mxu0 %v1105
        %1467 = vmatpush.msra.mxu0 %v1103
        %1468 = vmatpush.msra.mxu0 %v1101
        %1469 = vmatpush.msra.mxu0 %v1099
        %1470 = vmatpush.msra.mxu0 %v1097
        %1471 = vmatpush.msra.mxu0 %v1095
        %1472 = vmatpush.msra.mxu0 %v1093
        %1473 = vmatpush.msra.mxu0 %v1091
        %1474 = vmatpush.msra.mxu0 %v1089
        %1475 = vmatpush.msra.mxu0 %v1087
        %1476 = vmatpush.msra.mxu0 %v1085
        %1477 = vmatpush.msra.mxu0 %v1083
        %1478 = vmatpush.msra.mxu0 %v1081
        %1479 = vmatpush.msra.mxu0 %v1079
        %1480 = vmatpush.msra.mxu0 %v1077
        %1481 = vmatpush.msra.mxu0 %v1075
        %1482 = vmatmul.f32.gmra.mxu0 %v1002
        %v1483 = vpop.f32.mrf.mxu0
        %v1484 = vadd.f32 %v1464, %v1483
        %1485 = vdwg.mxu0
        %1486 = vmatpush.msra.mxu0 %v1137
        %1487 = vmatpush.msra.mxu0 %v1135
        %1488 = vmatpush.msra.mxu0 %v1133
        %1489 = vmatpush.msra.mxu0 %v1131
        %1490 = vmatpush.msra.mxu0 %v1129
        %1491 = vmatpush.msra.mxu0 %v1127
        %1492 = vmatpush.msra.mxu0 %v1125
        %1493 = vmatpush.msra.mxu0 %v1123
        %1494 = vmatpush.msra.mxu0 %v1121
        %1495 = vmatpush.msra.mxu0 %v1119
        %1496 = vmatpush.msra.mxu0 %v1117
        %1497 = vmatpush.msra.mxu0 %v1115
        %1498 = vmatpush.msra.mxu0 %v1113
        %1499 = vmatpush.msra.mxu0 %v1111
        %1500 = vmatpush.msra.mxu0 %v1109
        %1501 = vmatpush.msra.mxu0 %v1107
        %1502 = vmatmul.f32.gmra.mxu0 %v1003
        %v1503 = vpop.f32.mrf.mxu0
        %v1504 = vadd.f32 %v1484, %v1503
        %1505 = vdwg.mxu0
        %1506 = vmatpush.msra.mxu0 %v1169
        %1507 = vmatpush.msra.mxu0 %v1167
        %1508 = vmatpush.msra.mxu0 %v1165
        %1509 = vmatpush.msra.mxu0 %v1163
        %1510 = vmatpush.msra.mxu0 %v1161
        %1511 = vmatpush.msra.mxu0 %v1159
        %1512 = vmatpush.msra.mxu0 %v1157
        %1513 = vmatpush.msra.mxu0 %v1155
        %1514 = vmatpush.msra.mxu0 %v1153
        %1515 = vmatpush.msra.mxu0 %v1151
        %1516 = vmatpush.msra.mxu0 %v1149
        %1517 = vmatpush.msra.mxu0 %v1147
        %1518 = vmatpush.msra.mxu0 %v1145
        %1519 = vmatpush.msra.mxu0 %v1143
        %1520 = vmatpush.msra.mxu0 %v1141
        %1521 = vmatpush.msra.mxu0 %v1139
        %1522 = vmatmul.f32.gmra.mxu0 %v1004
        %v1523 = vpop.f32.mrf.mxu0
        %v1524 = vadd.f32 %v1504, %v1523
        %1525 = vdwg.mxu0
        %1526 = vmatpush.msra.mxu0 %v1201
        %1527 = vmatpush.msra.mxu0 %v1199
        %1528 = vmatpush.msra.mxu0 %v1197
        %1529 = vmatpush.msra.mxu0 %v1195
        %1530 = vmatpush.msra.mxu0 %v1193
        %1531 = vmatpush.msra.mxu0 %v1191
        %1532 = vmatpush.msra.mxu0 %v1189
        %1533 = vmatpush.msra.mxu0 %v1187
        %1534 = vmatpush.msra.mxu0 %v1185
        %1535 = vmatpush.msra.mxu0 %v1183
        %1536 = vmatpush.msra.mxu0 %v1181
        %1537 = vmatpush.msra.mxu0 %v1179
        %1538 = vmatpush.msra.mxu0 %v1177
        %1539 = vmatpush.msra.mxu0 %v1175
        %1540 = vmatpush.msra.mxu0 %v1173
        %1541 = vmatpush.msra.mxu0 %v1171
        %1542 = vmatmul.f32.gmra.mxu0 %v1005
        %v1543 = vpop.f32.mrf.mxu0
        %v1544 = vadd.f32 %v1524, %v1543
        %1545 = vdwg.mxu0
        %1546 = vmatpush.msra.mxu0 %v1233
        %1547 = vmatpush.msra.mxu0 %v1231
        %1548 = vmatpush.msra.mxu0 %v1229
        %1549 = vmatpush.msra.mxu0 %v1227
        %1550 = vmatpush.msra.mxu0 %v1225
        %1551 = vmatpush.msra.mxu0 %v1223
        %1552 = vmatpush.msra.mxu0 %v1221
        %1553 = vmatpush.msra.mxu0 %v1219
        %1554 = vmatpush.msra.mxu0 %v1217
        %1555 = vmatpush.msra.mxu0 %v1215
        %1556 = vmatpush.msra.mxu0 %v1213
        %1557 = vmatpush.msra.mxu0 %v1211
        %1558 = vmatpush.msra.mxu0 %v1209
        %1559 = vmatpush.msra.mxu0 %v1207
        %1560 = vmatpush.msra.mxu0 %v1205
        %1561 = vmatpush.msra.mxu0 %v1203
        %1562 = vmatmul.f32.gmra.mxu0 %v1006
        %v1563 = vpop.f32.mrf.mxu0
        %v1564 = vadd.f32 %v1544, %v1563
        %1565 = vdwg.mxu0
        %1566 = vmatpush.msra.mxu0 %v1265
        %1567 = vmatpush.msra.mxu0 %v1263
        %1568 = vmatpush.msra.mxu0 %v1261
        %1569 = vmatpush.msra.mxu0 %v1259
        %1570 = vmatpush.msra.mxu0 %v1257
        %1571 = vmatpush.msra.mxu0 %v1255
        %1572 = vmatpush.msra.mxu0 %v1253
        %1573 = vmatpush.msra.mxu0 %v1251
        %1574 = vmatpush.msra.mxu0 %v1249
        %1575 = vmatpush.msra.mxu0 %v1247
        %1576 = vmatpush.msra.mxu0 %v1245
        %1577 = vmatpush.msra.mxu0 %v1243
        %1578 = vmatpush.msra.mxu0 %v1241
        %1579 = vmatpush.msra.mxu0 %v1239
        %1580 = vmatpush.msra.mxu0 %v1237
        %1581 = vmatpush.msra.mxu0 %v1235
        %1582 = vmatmul.f32.gmra.mxu0 %v1007
        %v1583 = vpop.f32.mrf.mxu0
        %v1584 = vadd.f32 %v1564, %v1583
        %1585 = vdwg.mxu0
        %v1586 = vadd.f32 %v1008, %v1424
        %v1587 = vadd.f32 %v1009, %v1584
        %1588 = vst [vmem:[#allocation2] sm:$0xff] %v1586
        %1589 = vst [vmem:[#allocation2 + $0x8] sm:$0xff] %v1587
        // Predicated region
        $region73: #{tpu_custom_call.1} parent=47 // pred_check
          %p1590 = pneg %p398
        $region74: #{tpu_custom_call.1} parent=47 // pred_check_branch
          %1592 = sbr.rel (%p1590) target = $region76
        $region75: #{tpu_custom_call.1} parent=47 // pred_region
          %v1593 = vld [vmem:[%s4] sm:$0x3]
          %v1594 = vld [vmem:[%s5] sm:$0x3]
          %v1595 = vld [vmem:[#allocation11] sm:$0x3]
          %v1596 = vld [vmem:[#allocation2] sm:$0xff]
          %v1597 = vld [vmem:[#allocation2 + $0x8] sm:$0xff]
          %v1598 = vadd.f32 %v404, %v1596
          %v1599 = vadd.f32 %v405, %v1597
          %v1601 = vperm.slane %v1593, 0
          %v1602 = vperm.slane %v1593, 1
          %v1605 = vadd.f32 %v1598, %v1601
          %v1606 = vadd.f32 %v1599, %v1602
          %v1607 = vadd.f32 %v1605, %v1606
          %1608 = vadd.xlane.f32.xlu0 %v1607
          %v1609 = vpop.xlane.xlu0 %1608
          %v1610 = vrcp.pop 256.0
          %v1611 = vmul.f32 256.0, %v1610
          %v1612 = vsub.f32 1.0, %v1611
          %v1613 = vmul.f32 %v1610, %v1612
          %v1614 = vadd.f32 %v1610, %v1613
          %vm1615 = vweird.f32 %v1610
          %v1616 = vsel %vm1615, %v1610, %v1614
          %v1617 = vmul.f32 %v1609, %v1616
          %v1618 = vsub.f32 %v1605, %v1617
          %v1619 = vsub.f32 %v1606, %v1617
          %v1620 = vmul.f32 %v1618, %v1618
          %v1621 = vmul.f32 %v1619, %v1619
          %v1622 = vadd.f32 %v1620, %v1621
          %1623 = vadd.xlane.f32.xlu0 %v1622
          %v1624 = vpop.xlane.xlu0 %1623
          %v1625 = vmul.f32 %v1624, %v1616
          %v1626 = vadd.f32 %v1625, 1e-05
          %v1627 = vrsqrt.pop %v1626
          %v1628 = vmul.f32 %v1627, %v1626
          %v1629 = vmul.f32 %v1628, %v1627
          %v1630 = vmul.f32 0.5, %v1629
          %v1631 = vsub.f32 1.5, %v1630
          %v1632 = vmul.f32 %v1627, %v1631
          %vm1633 = vweird.f32 %v1626
          %vm1634 = vweird.f32 %v1627
          %vm1635 = vmor %vm1633, %vm1634
          %v1636 = vsel %vm1635, %v1627, %v1632
          %v1637 = vmul.f32 %v1618, %v1636
          %v1638 = vmul.f32 %v1619, %v1636
          %v1640 = vperm.slane %v1594, 0
          %v1641 = vperm.slane %v1594, 1
          %v1644 = vmul.f32 %v1637, %v1640
          %v1645 = vmul.f32 %v1638, %v1641
          %v1647 = vperm.slane %v1595, 0
          %v1648 = vperm.slane %v1595, 1
          %v1651 = vadd.f32 %v1644, %v1647
          %v1652 = vadd.f32 %v1645, %v1648
          %1653 = vst [vmem:[%s394] sm:$0xff] %v1651
          %1654 = vst [vmem:[%s394 + $0x8] sm:$0xff] %v1652
        $region76: #{tpu_custom_call.1} parent=47 // pred_fallthru
          _
        %s1655 = sand.u32 %s213, 1
        %s1656 = scalar_lea.sflag [#allocation5], %s1655
        %s1657 = sand.u32 %s213, 1
        %s1658 = smul.addr %s1657, 16
        %s1659 = scalar_lea.vmem [#allocation12], %s1658
        // Predicated region
        $region77: #{tpu_custom_call.1} parent=47 // pred_check
          %p1660 = pneg %p223
        $region78: #{tpu_custom_call.1} parent=47 // pred_check_branch
          %1662 = sbr.rel (%p1660) target = $region80
        $region79: #{tpu_custom_call.1} parent=47 // pred_region
          %1664 = vsyncadd %s1656, 0
          %s1665 = smul.addr %s30, 2
          %s1666 = smul.addr %s1665, 8
          %s1667 = scalar_lea.hbm %s7, %s1666
          %s1669 = sshll.u32 %s1659, 4
          %s1670 = int_to_ptr.vmem [resolvable:$true] %s1669
          %s1671 = sshll.u32 %s1667, 4
          %s1672 = int_to_ptr.hbm [resolvable:$true] %s1671
          %1674 = dma.vmem_to_hbm [thread:$0]  %s1670, 256, %s1672, %s1656
        $region80: #{tpu_custom_call.1} parent=47 // pred_fallthru
          _
      $region48: #{tpu_custom_call.1} parent=5 // pred_fallthru
        _
      %p1675 = scmp.le.s32.totalorder 2, %s21
      // Predicated region
      $region81: #{tpu_custom_call.1} parent=5 // pred_check
        %p1676 = pneg %p1675
      $region82: #{tpu_custom_call.1} parent=5 // pred_check_branch
        %1678 = sbr.rel (%p1676) target = $region84
      $region83: #{tpu_custom_call.1} parent=5 // pred_region
        %s1679 = ssub.s32 %s21, 2
        // Predicated region
        $region85: #{tpu_custom_call.1} parent=83 // pred_check
          %p1680 = pneg %p229
        $region86: #{tpu_custom_call.1} parent=83 // pred_check_branch
          %1682 = sbr.rel (%p1680) target = $region88
        $region87: #{tpu_custom_call.1} parent=83 // pred_region
          %s1683 = sand.u32 %s214, 1
          %s1684 = scalar_lea.sflag [#allocation5], %s1683
          %s1685 = sand.u32 %s214, 1
          %s1686 = smul.addr %s1685, 16
          %s1687 = scalar_lea.vmem [#allocation12], %s1686
          %1689 = dma.done %s1684, 256
        $region88: #{tpu_custom_call.1} parent=83 // pred_fallthru
          _
      $region84: #{tpu_custom_call.1} parent=5 // pred_fallthru
        _
    $region6: #{tpu_custom_call.1} parent=1 // loop_footer
      %s25 = sadd.s32 1, %s21
    $region7: #{tpu_custom_call.1} parent=1 // loop_footer_branch
      %20 = sbr.rel target = $region3
    $region8: #{tpu_custom_call.1} parent=1 // loop_exit
      _
    %1690 = vsyncpa [#allocation4], 1
    %s1691 = scalar_lea.sflag [#allocation4], 1
    %1692 = vsyncpa %s1691, 1
    %1693 = vsyncpa [#allocation7], 1
    %1694 = vsyncpa [#allocation10], 1
    %1695 = vsyncpa [#allocation5], 1
    %s1696 = scalar_lea.sflag [#allocation5], 1
    %1697 = vsyncpa %s1696, 1

</llo_original>
